<compile_context>
chip_gen: v7x
topology: tpu7x:2x2x1
jax: 0.10.0
libtpu: 0.0.40
codegen_flags: <defaults>
</compile_context>

<pallas_src>
import functools

import jax
import jax.numpy as jnp
from jax import lax
from jax.experimental import pallas as pl
from jax.experimental.pallas import tpu as pltpu


GP = 128  # per-gate / state lane-tile width (one full lane tile)


# -----------------------------------------------------------------------------
# Pallas kernel: one decoder step for the WHOLE batch (single grid step).
# -----------------------------------------------------------------------------
def decoder_step_kernel(
    tok_ref,                                   # SMEM (B,) int32 token ids (scalar prefetch)
    emb_tbl_ref,                               # VMEM (V, E)   f32 embedding table
    h_ref, c_ref,                              # VMEM (B, GP)  f32 lane-padded LSTM state
    enc_ref,                                   # VMEM (B, SP, De) f32 (S zero-padded to SP)
    w1t_ref, w2t_ref, db_ref, v_ref,           # attention params
    wge_ref, wgh_ref, wgc_ref, bg_ref,         # LSTM gate params (per-gate 128-lane tiles)
    wout_ref, bout_ref,                        # lane-padded vocab projection
    pred_ref, state_ref,                       # outputs: (B, VP), (2, B, GP)
    *, seq_len,
):
    B, SP, De = enc_ref.shape
    H = w1t_ref.shape[-1]
    bf = jnp.bfloat16
    f32 = jnp.float32

    enc = enc_ref[...]                          # (B, SP, De) f32
    enc_bf = enc.astype(bf)
    h_pad = h_ref[...]                          # (B, GP) f32, lanes >= H are zero
    h_bf = h_pad.astype(bf)

    # ---- fused embedding gather (ids in SMEM, table in VMEM) -----------------
    rows = [emb_tbl_ref[pl.ds(tok_ref[b], 1), :] for b in range(B)]   # B x (1, E)
    emb_bf = jnp.concatenate(rows, axis=0).astype(bf)                 # (B, E)

    # ---- Bahdanau attention, sublane-major scores ----------------------------
    # SP is a multiple of 8, so this reshape is tile-aligned (no relayout).
    ep = jnp.dot(enc_bf.reshape(B * SP, De), w2t_ref[...],
                 preferred_element_type=f32).reshape(B, SP, H)
    # db = b1 + b2 pre-folded; zero-padded rows of w1t make the padded h lanes inert.
    dp = jnp.dot(h_bf, w1t_ref[...], preferred_element_type=f32) + db_ref[...]   # (B, H)
    attn_in = jnp.tanh(ep + dp[:, None, :])                           # (B, SP, H) f32
    # attn_v bias dropped: constant shift on every score is a softmax no-op.
    scores = jnp.sum(attn_in * v_ref[...], axis=-1, keepdims=True)    # (B, SP, 1)

    pos = lax.broadcasted_iota(jnp.int32, (1, SP, 1), 1)
    scores = jnp.where(pos < seq_len, scores, jnp.float32(-1e30))     # mask padded rows
    m = jnp.max(scores, axis=1, keepdims=True)                        # sublane reduce
    e = jnp.exp(scores - m)
    denom = jnp.sum(e, axis=1, keepdims=True)
    attn_w = e * pl.reciprocal(denom, approx=True)                    # (B, SP, 1)
    # attn_w is already sublane-major -> no lane->sublane relayout here.
    context = jnp.sum(attn_w * enc, axis=1)                           # (B, De) f32

    # ---- LSTM gates: three MXU pushes into one f32 accumulator ---------------
    gates = (jnp.dot(emb_bf, wge_ref[...], preferred_element_type=f32)
             + jnp.dot(h_bf, wgh_ref[...], preferred_element_type=f32)
             + jnp.dot(context.astype(bf), wgc_ref[...], preferred_element_type=f32)
             + bg_ref[...])                                           # (B, 4*GP)

    # Per-gate 128-lane tiles -> tile-aligned slices, no lane shifts.
    i_g = jax.nn.sigmoid(gates[:, 0 * GP:1 * GP])
    f_g = jax.nn.sigmoid(gates[:, 1 * GP:2 * GP])
    g_g = jnp.tanh(gates[:, 2 * GP:3 * GP])
    o_g = jax.nn.sigmoid(gates[:, 3 * GP:4 * GP])
    c_new = f_g * c_ref[...] + i_g * g_g                              # padded lanes stay 0
    h_new = o_g * jnp.tanh(c_new)

    # ---- vocab projection: lane-dense padded output ---------------------------
    pred_ref[...] = (jnp.dot(h_new.astype(bf), wout_ref[...],
                             preferred_element_type=f32) + bout_ref[...])

    # ---- packed state: two full, unmasked stores ------------------------------
    state_ref[0] = h_new
    state_ref[1] = c_new


# -----------------------------------------------------------------------------
# One-time weight preparation (hoisted out of the per-step path).
# -----------------------------------------------------------------------------
def prepare_decoder_params(params):
    f32, bf = jnp.float32, jnp.bfloat16
    V, E = params["embedding"].shape
    H = params["lstm_w_hh"].shape[1]
    De = params["attn_W2_w"].shape[1]
    assert H <= GP, "this kernel assumes hidden_dim <= 128"
    VP = ((V + 127) // 128) * 128

    wih = params["lstm_w_ih"].astype(f32)      # (4H, E+De), gate order [i, f, g, o]
    whh = params["lstm_w_hh"].astype(f32)      # (4H, H)
    b_g = (params["lstm_b_ih"] + params["lstm_b_hh"]).astype(f32)

    # Per-gate 128-lane tiles: gate k occupies lanes [k*GP, k*GP + H); rest zero.
    wge = jnp.zeros((E, 4 * GP), f32)
    wgh = jnp.zeros((GP, 4 * GP), f32)
    wgc = jnp.zeros((De, 4 * GP), f32)
    bg = jnp.zeros((1, 4 * GP), f32)
    for k in range(4):
        wge = wge.at[:, k * GP:k * GP + H].set(wih[k * H:(k + 1) * H, :E].T)
        wgh = wgh.at[:H, k * GP:k * GP + H].set(whh[k * H:(k + 1) * H, :].T)
        wgc = wgc.at[:, k * GP:k * GP + H].set(wih[k * H:(k + 1) * H, E:].T)
        bg = bg.at[0, k * GP:k * GP + H].set(b_g[k * H:(k + 1) * H])

    # Attention weights: pre-transposed; W1 rows padded so the lane-padded h is inert.
    w1t = jnp.zeros((GP, H), f32).at[:H, :].set(params["attn_W1_w"].T)
    # Output projection: rows padded to GP, cols zero-padded to lane-dense VP.
    wout = jnp.zeros((GP, VP), f32).at[:H, :V].set(params["fc_out_w"].T)
    bout = jnp.zeros((1, VP), f32).at[0, :V].set(params["fc_out_b"])

    return {
        "V": V, "E": E, "H": H, "De": De, "VP": VP,
        "emb_tbl": params["embedding"].astype(f32),                        # (V, E)
        "w1t": w1t.astype(bf),                                             # (GP, H)
        "w2t": params["attn_W2_w"].T.astype(bf),                           # (De, H)
        "db": (params["attn_W1_b"] + params["attn_W2_b"]).reshape(1, H).astype(f32),
        "v": params["attn_v_w"].reshape(1, 1, H).astype(f32),
        # attn_v bias omitted (softmax shift invariance).
        "wge": wge.astype(bf), "wgh": wgh.astype(bf), "wgc": wgc.astype(bf),
        "bg": bg,
        "wout": wout.astype(bf), "bout": bout,
    }


# -----------------------------------------------------------------------------
# Per-step wrapper: only activation glue (token ids, enc padding, state padding).
# -----------------------------------------------------------------------------
def decoder_step(prep, input_token, hidden, encoder_outputs):
    h0, c0 = hidden
    f32 = jnp.float32
    B, S, De = encoder_outputs.shape
    H, V, VP, E = prep["H"], prep["V"], prep["VP"], prep["E"]
    SP = ((S + 7) // 8) * 8                    # sublane-aligned encoder length

    tok = input_token[:, 0].astype(jnp.int32)  # (B,)
    # TODO(synk): nn.Dropout on the embedding is identity in eval mode; no RNG applied.

    enc = encoder_outputs.astype(f32)
    if SP != S:
        enc = jnp.zeros((B, SP, De), f32).at[:, :S, :].set(enc)

    # Lane-padded (B,128) h/c slabs. In a real decode loop the padded state the
    # kernel returns would be carried directly, making this re-pad unnecessary.
    h_pad = jnp.zeros((B, GP), f32).at[:, :H].set(h0[-1].astype(f32))
    c_pad = jnp.zeros((B, GP), f32).at[:, :H].set(c0[-1].astype(f32))

    tensor_inputs = [prep["emb_tbl"], h_pad, c_pad, enc,
                     prep["w1t"], prep["w2t"], prep["db"], prep["v"],
                     prep["wge"], prep["wgh"], prep["wgc"], prep["bg"],
                     prep["wout"], prep["bout"]]

    def vfull(shape):
        # index_map receives (grid_idx, scalar_prefetch_ref)
        return pl.BlockSpec(shape, lambda i, tok_ref, n=len(shape): (0,) * n)

    grid_spec = pltpu.PrefetchScalarGridSpec(
        num_scalar_prefetch=1,
        grid=(1,),
        in_specs=[vfull(a.shape) for a in tensor_inputs],
        out_specs=[vfull((B, VP)), vfull((2, B, GP))],
    )

    flops = 2 * B * (SP * De * H + GP * H + SP * H + SP * De
                     + (E + GP + De) * 4 * GP + GP * VP)
    transcendentals = B * (SP * H + SP + 5 * GP + 1)
    bytes_accessed = (tok.size * 4
                      + sum(int(a.size) * a.dtype.itemsize for a in tensor_inputs)
                      + B * (VP + 2 * GP) * 4)

    pred_pad, state = pl.pallas_call(
        functools.partial(decoder_step_kernel, seq_len=S),
        grid_spec=grid_spec,
        out_shape=(jax.ShapeDtypeStruct((B, VP), f32),
                   jax.ShapeDtypeStruct((2, B, GP), f32)),
        compiler_params=pltpu.CompilerParams(dimension_semantics=("arbitrary",)),
        cost_estimate=pl.CostEstimate(flops=flops,
                                      transcendentals=transcendentals,
                                      bytes_accessed=bytes_accessed),
    )(tok, *tensor_inputs)

    prediction = pred_pad[:, :V]
    h_new = state[0, :, :H][None]              # (num_layers=1, B, H)
    c_new = state[1, :, :H][None]
    return prediction, (h_new, c_new)


# -----------------------------------------------------------------------------
# Pure-JAX reference (matches the PyTorch forward semantics, f32)
# -----------------------------------------------------------------------------
def reference_forward(params, input_token, h0, c0, enc):
    emb = params["embedding"][input_token[:, 0]]
    h_att = h0[-1]
    enc_proj = enc @ params["attn_W2_w"].T + params["attn_W2_b"]
    dec_proj = (h_att @ params["attn_W1_w"].T + params["attn_W1_b"])[:, None, :]
    attn_in = jnp.tanh(dec_proj + enc_proj)
    scores = (attn_in @ params["attn_v_w"].T + params["attn_v_b"])[..., 0]
    attn_w = jax.nn.softmax(scores, axis=1)
    context = jnp.einsum("bs,bsd->bd", attn_w, enc)
    x = jnp.concatenate([emb, context], axis=1)
    gates = (x @ params["lstm_w_ih"].T + params["lstm_b_ih"]
             + h_att @ params["lstm_w_hh"].T + params["lstm_b_hh"])
    H = h0.shape[-1]
    i = jax.nn.sigmoid(gates[:, :H])
    f = jax.nn.sigmoid(gates[:, H:2 * H])
    g = jnp.tanh(gates[:, 2 * H:3 * H])
    o = jax.nn.sigmoid(gates[:, 3 * H:])
    c_new = f * c0[-1] + i * g
    h_new = o * jnp.tanh(c_new)
    pred = h_new @ params["fc_out_w"].T + params["fc_out_b"]
    return pred, h_new[None], c_new[None]


if __name__ == "__main__":
    key = jax.random.PRNGKey(0)
    B, S = 2, 10                      # batch, encoder sequence length
    V, E, H, De = 50, 16, 32, 24      # vocab, embed_dim, hidden_dim, encoder_output_dim
    ks = jax.random.split(key, 17)

    def u(k, shape, scale=0.1):
        return jax.random.uniform(k, shape, jnp.float32, -scale, scale)

    params = {
        "embedding": u(ks[0], (V, E)),
        "attn_W1_w": u(ks[1], (H, H)),   "attn_W1_b": u(ks[2], (H,)),
        "attn_W2_w": u(ks[3], (H, De)),  "attn_W2_b": u(ks[4], (H,)),
        "attn_v_w":  u(ks[5], (1, H)),   "attn_v_b":  u(ks[6], (1,)),
        "lstm_w_ih": u(ks[7], (4 * H, E + De)),
        "lstm_w_hh": u(ks[8], (4 * H, H)),
        "lstm_b_ih": u(ks[9], (4 * H,)),
        "lstm_b_hh": u(ks[10], (4 * H,)),
        "fc_out_w":  u(ks[11], (V, H)),  "fc_out_b":  u(ks[12], (V,)),
    }

    input_token = jax.random.randint(ks[13], (B, 1), 0, V)          # (B, 1) int
    h0 = u(ks[14], (1, B, H), 0.5)                                  # (num_layers, B, H)
    c0 = u(ks[15], (1, B, H), 0.5)
    encoder_outputs = jax.random.normal(ks[16], (B, S, De), jnp.float32)

    # Weight prep runs once per model; decoder_step is the cheap per-step call.
    prep = prepare_decoder_params(params)
    prediction, (h1, c1) = decoder_step(prep, input_token, (h0, c0), encoder_outputs)
    jax.block_until_ready((prediction, h1, c1))

    # verify against pure-JAX f32 reference (bf16 MXU inputs -> relaxed tolerance)
    rpred, rh, rc = reference_forward(params, input_token, h0, c0, encoder_outputs)
    assert jnp.allclose(prediction, rpred, atol=2e-2, rtol=2e-2)
    assert jnp.allclose(h1, rh, atol=2e-2, rtol=2e-2)
    assert jnp.allclose(c1, rc, atol=2e-2, rtol=2e-2)

    print("KERNEL_OK")
</pallas_src>

<mosaic_0001>
module attributes {stable_mosaic.version = 11 : i64} {
  func.func @decoder_step_kernel(%arg0: i32, %arg1: memref<2xi32, #tpu.memory_space<smem>>, %arg2: memref<50x16xf32, #tpu.memory_space<vmem>>, %arg3: memref<2x128xf32, #tpu.memory_space<vmem>>, %arg4: memref<2x128xf32, #tpu.memory_space<vmem>>, %arg5: memref<2x16x24xf32, #tpu.memory_space<vmem>>, %arg6: memref<128x32xbf16, #tpu.memory_space<vmem>>, %arg7: memref<24x32xbf16, #tpu.memory_space<vmem>>, %arg8: memref<1x32xf32, #tpu.memory_space<vmem>>, %arg9: memref<1x1x32xf32, #tpu.memory_space<vmem>>, %arg10: memref<16x512xbf16, #tpu.memory_space<vmem>>, %arg11: memref<128x512xbf16, #tpu.memory_space<vmem>>, %arg12: memref<24x512xbf16, #tpu.memory_space<vmem>>, %arg13: memref<1x512xf32, #tpu.memory_space<vmem>>, %arg14: memref<128x128xbf16, #tpu.memory_space<vmem>>, %arg15: memref<1x128xf32, #tpu.memory_space<vmem>>, %arg16: memref<2x128xf32, #tpu.memory_space<vmem>>, %arg17: memref<2x2x128xf32, #tpu.memory_space<vmem>>) attributes {dimension_semantics = [#tpu.dimension_semantics<arbitrary>], iteration_bounds = array<i64: 1>, scalar_prefetch = 1 : i64, scratch_operands = 0 : i64, tpu.core_type = #tpu.core_type<tc>, window_params = [{pipeline_mode = #tpu.pipeline_mode<synchronous>, transform_indices = @transform_0, window_bounds = array<i64: 50, 16>}, {pipeline_mode = #tpu.pipeline_mode<synchronous>, transform_indices = @transform_1, window_bounds = array<i64: 2, 128>}, {pipeline_mode = #tpu.pipeline_mode<synchronous>, transform_indices = @transform_2, window_bounds = array<i64: 2, 128>}, {pipeline_mode = #tpu.pipeline_mode<synchronous>, transform_indices = @transform_3, window_bounds = array<i64: 2, 16, 24>}, {pipeline_mode = #tpu.pipeline_mode<synchronous>, transform_indices = @transform_4, window_bounds = array<i64: 128, 32>}, {pipeline_mode = #tpu.pipeline_mode<synchronous>, transform_indices = @transform_5, window_bounds = array<i64: 24, 32>}, {pipeline_mode = #tpu.pipeline_mode<synchronous>, transform_indices = @transform_6, window_bounds = array<i64: 1, 32>}, {pipeline_mode = #tpu.pipeline_mode<synchronous>, transform_indices = @transform_7, window_bounds = array<i64: 1, 1, 32>}, {pipeline_mode = #tpu.pipeline_mode<synchronous>, transform_indices = @transform_8, window_bounds = array<i64: 16, 512>}, {pipeline_mode = #tpu.pipeline_mode<synchronous>, transform_indices = @transform_9, window_bounds = array<i64: 128, 512>}, {pipeline_mode = #tpu.pipeline_mode<synchronous>, transform_indices = @transform_10, window_bounds = array<i64: 24, 512>}, {pipeline_mode = #tpu.pipeline_mode<synchronous>, transform_indices = @transform_11, window_bounds = array<i64: 1, 512>}, {pipeline_mode = #tpu.pipeline_mode<synchronous>, transform_indices = @transform_12, window_bounds = array<i64: 128, 128>}, {pipeline_mode = #tpu.pipeline_mode<synchronous>, transform_indices = @transform_13, window_bounds = array<i64: 1, 128>}, {pipeline_mode = #tpu.pipeline_mode<synchronous>, transform_indices = @transform_14, window_bounds = array<i64: 2, 128>}, {pipeline_mode = #tpu.pipeline_mode<synchronous>, transform_indices = @transform_15, window_bounds = array<i64: 2, 2, 128>}]} {
    %c0 = arith.constant 0 : index
    %c0_0 = arith.constant 0 : index
    %c0_1 = arith.constant 0 : index
    %0 = vector.load %arg5[%c0, %c0_0, %c0_1] : memref<2x16x24xf32, #tpu.memory_space<vmem>>, vector<2x16x24xf32>
    %1 = arith.truncf %0 : vector<2x16x24xf32> to vector<2x16x24xbf16>
    %c0_2 = arith.constant 0 : index
    %c0_3 = arith.constant 0 : index
    %2 = vector.load %arg3[%c0_2, %c0_3] : memref<2x128xf32, #tpu.memory_space<vmem>>, vector<2x128xf32>
    %3 = arith.truncf %2 : vector<2x128xf32> to vector<2x128xbf16>
    %c0_4 = arith.constant 0 : index
    %4 = memref.load %arg1[%c0_4] : memref<2xi32, #tpu.memory_space<smem>>
    %5 = arith.index_cast %4 : i32 to index
    %c0_5 = arith.constant 0 : index
    %6 = vector.load %arg2[%5, %c0_5] : memref<50x16xf32, #tpu.memory_space<vmem>>, vector<1x16xf32>
    %c1 = arith.constant 1 : index
    %7 = memref.load %arg1[%c1] : memref<2xi32, #tpu.memory_space<smem>>
    %8 = arith.index_cast %7 : i32 to index
    %c0_6 = arith.constant 0 : index
    %9 = vector.load %arg2[%8, %c0_6] : memref<50x16xf32, #tpu.memory_space<vmem>>, vector<1x16xf32>
    %10 = tpu.concatenate %6, %9 in 0 : vector<1x16xf32>, vector<1x16xf32> -> vector<2x16xf32>
    %11 = arith.truncf %10 : vector<2x16xf32> to vector<2x16xbf16>
    %12 = vector.shape_cast %1 : vector<2x16x24xbf16> to vector<32x24xbf16>
    %c0_7 = arith.constant 0 : index
    %c0_8 = arith.constant 0 : index
    %13 = vector.load %arg7[%c0_7, %c0_8] : memref<24x32xbf16, #tpu.memory_space<vmem>>, vector<24x32xbf16>
    %cst = arith.constant dense<0.000000e+00> : vector<32x32xf32>
    %14 = tpu.matmul %12, %13, %cst {dimension_numbers = #tpu.dot_dimension_numbers<[1], [0], [0], [1], [0, 0, 1, 1], [], []>} : vector<32x24xbf16>, vector<24x32xbf16>, vector<32x32xf32> -> vector<32x32xf32>
    %15 = vector.shape_cast %14 : vector<32x32xf32> to vector<2x16x32xf32>
    %c0_9 = arith.constant 0 : index
    %c0_10 = arith.constant 0 : index
    %16 = vector.load %arg6[%c0_9, %c0_10] : memref<128x32xbf16, #tpu.memory_space<vmem>>, vector<128x32xbf16>
    %cst_11 = arith.constant dense<0.000000e+00> : vector<2x32xf32>
    %17 = tpu.matmul %3, %16, %cst_11 {dimension_numbers = #tpu.dot_dimension_numbers<[1], [0], [0], [1], [0, 0, 1, 1], [], []>} : vector<2x128xbf16>, vector<128x32xbf16>, vector<2x32xf32> -> vector<2x32xf32>
    %c0_12 = arith.constant 0 : index
    %c0_13 = arith.constant 0 : index
    %18 = vector.load %arg8[%c0_12, %c0_13] : memref<1x32xf32, #tpu.memory_space<vmem>>, vector<1x32xf32>
    %19 = vector.broadcast %18 : vector<1x32xf32> to vector<2x32xf32>
    %20 = arith.addf %17, %19 : vector<2x32xf32>
    %21 = vector.shape_cast %20 : vector<2x32xf32> to vector<2x1x32xf32>
    %22 = vector.broadcast %21 : vector<2x1x32xf32> to vector<2x16x32xf32>
    %23 = arith.addf %15, %22 : vector<2x16x32xf32>
    %24 = math.tanh %23 : vector<2x16x32xf32>
    %c0_14 = arith.constant 0 : index
    %c0_15 = arith.constant 0 : index
    %c0_16 = arith.constant 0 : index
    %25 = vector.load %arg9[%c0_14, %c0_15, %c0_16] : memref<1x1x32xf32, #tpu.memory_space<vmem>>, vector<1x1x32xf32>
    %26 = vector.broadcast %25 : vector<1x1x32xf32> to vector<2x16x32xf32>
    %27 = arith.mulf %24, %26 : vector<2x16x32xf32>
    %cst_17 = arith.constant dense<0.000000e+00> : vector<2x16xf32>
    %28 = vector.multi_reduction <add>, %27, %cst_17 [2] : vector<2x16x32xf32> to vector<2x16xf32>
    %29 = vector.shape_cast %28 : vector<2x16xf32> to vector<2x16x1xf32>
    %30 = tpu.iota {dimensions = array<i32: 1>} : vector<1x16x1xi32>
    %c10_i32 = arith.constant 10 : i32
    %31 = vector.broadcast %c10_i32 : i32 to vector<1x16x1xi32>
    %32 = arith.cmpi slt, %30, %31 : vector<1x16x1xi32>
    %cst_18 = arith.constant -1.000000e+30 : f32
    %33 = vector.shape_cast %32 : vector<1x16x1xi1> to vector<1x16x1xi1>
    %34 = vector.broadcast %33 : vector<1x16x1xi1> to vector<2x16x1xi1>
    %35 = vector.broadcast %cst_18 : f32 to vector<2x16x1xf32>
    %36 = arith.select %34, %29, %35 : vector<2x16x1xi1>, vector<2x16x1xf32>
    %cst_19 = arith.constant dense<0xFF800000> : vector<2x1xf32>
    %37 = vector.multi_reduction <maximumf>, %36, %cst_19 [1] : vector<2x16x1xf32> to vector<2x1xf32>
    %38 = vector.shape_cast %37 : vector<2x1xf32> to vector<2x1x1xf32>
    %39 = vector.broadcast %38 : vector<2x1x1xf32> to vector<2x16x1xf32>
    %40 = arith.subf %36, %39 : vector<2x16x1xf32>
    %41 = math.exp %40 : vector<2x16x1xf32>
    %cst_20 = arith.constant dense<0.000000e+00> : vector<2x1xf32>
    %42 = vector.multi_reduction <add>, %41, %cst_20 [1] : vector<2x16x1xf32> to vector<2x1xf32>
    %43 = vector.shape_cast %42 : vector<2x1xf32> to vector<2x1x1xf32>
    %44 = tpu.reciprocal %43 {approx = true} : vector<2x1x1xf32> -> vector<2x1x1xf32>
    %45 = vector.broadcast %44 : vector<2x1x1xf32> to vector<2x16x1xf32>
    %46 = arith.mulf %41, %45 : vector<2x16x1xf32>
    %47 = vector.broadcast %46 : vector<2x16x1xf32> to vector<2x16x24xf32>
    %48 = arith.mulf %47, %0 : vector<2x16x24xf32>
    %cst_21 = arith.constant dense<0.000000e+00> : vector<2x24xf32>
    %49 = vector.multi_reduction <add>, %48, %cst_21 [1] : vector<2x16x24xf32> to vector<2x24xf32>
    %c0_22 = arith.constant 0 : index
    %c0_23 = arith.constant 0 : index
    %50 = vector.load %arg10[%c0_22, %c0_23] : memref<16x512xbf16, #tpu.memory_space<vmem>>, vector<16x512xbf16>
    %cst_24 = arith.constant dense<0.000000e+00> : vector<2x512xf32>
    %51 = tpu.matmul %11, %50, %cst_24 {dimension_numbers = #tpu.dot_dimension_numbers<[1], [0], [0], [1], [0, 0, 1, 1], [], []>} : vector<2x16xbf16>, vector<16x512xbf16>, vector<2x512xf32> -> vector<2x512xf32>
    %c0_25 = arith.constant 0 : index
    %c0_26 = arith.constant 0 : index
    %52 = vector.load %arg11[%c0_25, %c0_26] : memref<128x512xbf16, #tpu.memory_space<vmem>>, vector<128x512xbf16>
    %cst_27 = arith.constant dense<0.000000e+00> : vector<2x512xf32>
    %53 = tpu.matmul %3, %52, %cst_27 {dimension_numbers = #tpu.dot_dimension_numbers<[1], [0], [0], [1], [0, 0, 1, 1], [], []>} : vector<2x128xbf16>, vector<128x512xbf16>, vector<2x512xf32> -> vector<2x512xf32>
    %54 = arith.addf %51, %53 : vector<2x512xf32>
    %55 = arith.truncf %49 : vector<2x24xf32> to vector<2x24xbf16>
    %c0_28 = arith.constant 0 : index
    %c0_29 = arith.constant 0 : index
    %56 = vector.load %arg12[%c0_28, %c0_29] : memref<24x512xbf16, #tpu.memory_space<vmem>>, vector<24x512xbf16>
    %cst_30 = arith.constant dense<0.000000e+00> : vector<2x512xf32>
    %57 = tpu.matmul %55, %56, %cst_30 {dimension_numbers = #tpu.dot_dimension_numbers<[1], [0], [0], [1], [0, 0, 1, 1], [], []>} : vector<2x24xbf16>, vector<24x512xbf16>, vector<2x512xf32> -> vector<2x512xf32>
    %58 = arith.addf %54, %57 : vector<2x512xf32>
    %c0_31 = arith.constant 0 : index
    %c0_32 = arith.constant 0 : index
    %59 = vector.load %arg13[%c0_31, %c0_32] : memref<1x512xf32, #tpu.memory_space<vmem>>, vector<1x512xf32>
    %60 = vector.broadcast %59 : vector<1x512xf32> to vector<2x512xf32>
    %61 = arith.addf %58, %60 : vector<2x512xf32>
    %62 = vector.extract_strided_slice %61 {offsets = [0, 0], sizes = [2, 128], strides = [1, 1]} : vector<2x512xf32> to vector<2x128xf32>
    %63 = arith.negf %62 : vector<2x128xf32>
    %64 = math.exp %63 : vector<2x128xf32>
    %cst_33 = arith.constant 1.000000e+00 : f32
    %65 = vector.broadcast %cst_33 : f32 to vector<2x128xf32>
    %66 = arith.addf %65, %64 : vector<2x128xf32>
    %67 = arith.divf %65, %66 : vector<2x128xf32>
    %68 = vector.extract_strided_slice %61 {offsets = [0, 128], sizes = [2, 128], strides = [1, 1]} : vector<2x512xf32> to vector<2x128xf32>
    %69 = arith.negf %68 : vector<2x128xf32>
    %70 = math.exp %69 : vector<2x128xf32>
    %cst_34 = arith.constant 1.000000e+00 : f32
    %71 = vector.broadcast %cst_34 : f32 to vector<2x128xf32>
    %72 = arith.addf %71, %70 : vector<2x128xf32>
    %73 = arith.divf %71, %72 : vector<2x128xf32>
    %74 = vector.extract_strided_slice %61 {offsets = [0, 256], sizes = [2, 128], strides = [1, 1]} : vector<2x512xf32> to vector<2x128xf32>
    %75 = math.tanh %74 : vector<2x128xf32>
    %76 = vector.extract_strided_slice %61 {offsets = [0, 384], sizes = [2, 128], strides = [1, 1]} : vector<2x512xf32> to vector<2x128xf32>
    %77 = arith.negf %76 : vector<2x128xf32>
    %78 = math.exp %77 : vector<2x128xf32>
    %cst_35 = arith.constant 1.000000e+00 : f32
    %79 = vector.broadcast %cst_35 : f32 to vector<2x128xf32>
    %80 = arith.addf %79, %78 : vector<2x128xf32>
    %81 = arith.divf %79, %80 : vector<2x128xf32>
    %c0_36 = arith.constant 0 : index
    %c0_37 = arith.constant 0 : index
    %82 = vector.load %arg4[%c0_36, %c0_37] : memref<2x128xf32, #tpu.memory_space<vmem>>, vector<2x128xf32>
    %83 = arith.mulf %73, %82 : vector<2x128xf32>
    %84 = arith.mulf %67, %75 : vector<2x128xf32>
    %85 = arith.addf %83, %84 : vector<2x128xf32>
    %86 = math.tanh %85 : vector<2x128xf32>
    %87 = arith.mulf %81, %86 : vector<2x128xf32>
    %88 = arith.truncf %87 : vector<2x128xf32> to vector<2x128xbf16>
    %c0_38 = arith.constant 0 : index
    %c0_39 = arith.constant 0 : index
    %89 = vector.load %arg14[%c0_38, %c0_39] : memref<128x128xbf16, #tpu.memory_space<vmem>>, vector<128x128xbf16>
    %cst_40 = arith.constant dense<0.000000e+00> : vector<2x128xf32>
    %90 = tpu.matmul %88, %89, %cst_40 {dimension_numbers = #tpu.dot_dimension_numbers<[1], [0], [0], [1], [0, 0, 1, 1], [], []>} : vector<2x128xbf16>, vector<128x128xbf16>, vector<2x128xf32> -> vector<2x128xf32>
    %c0_41 = arith.constant 0 : index
    %c0_42 = arith.constant 0 : index
    %91 = vector.load %arg15[%c0_41, %c0_42] : memref<1x128xf32, #tpu.memory_space<vmem>>, vector<1x128xf32>
    %92 = vector.broadcast %91 : vector<1x128xf32> to vector<2x128xf32>
    %93 = arith.addf %90, %92 : vector<2x128xf32>
    %c0_43 = arith.constant 0 : index
    %c0_44 = arith.constant 0 : index
    %94 = vector.load %arg16[%c0_43, %c0_44] : memref<2x128xf32, #tpu.memory_space<vmem>>, vector<2x128xf32>
    tpu.vector_store %arg16[%c0_43, %c0_44], %93 {strides = array<i32>} : memref<2x128xf32, #tpu.memory_space<vmem>>, vector<2x128xf32>,
    %c0_45 = arith.constant 0 : index
    %c0_46 = arith.constant 0 : index
    %c0_47 = arith.constant 0 : index
    %95 = vector.load %arg17[%c0_45, %c0_46, %c0_47] : memref<2x2x128xf32, #tpu.memory_space<vmem>>, vector<1x2x128xf32>
    %96 = vector.shape_cast %95 : vector<1x2x128xf32> to vector<2x128xf32>
    %97 = vector.shape_cast %87 : vector<2x128xf32> to vector<1x2x128xf32>
    tpu.vector_store %arg17[%c0_45, %c0_46, %c0_47], %97 {strides = array<i32>} : memref<2x2x128xf32, #tpu.memory_space<vmem>>, vector<1x2x128xf32>,
    %c1_48 = arith.constant 1 : index
    %c0_49 = arith.constant 0 : index
    %c0_50 = arith.constant 0 : index
    %98 = vector.load %arg17[%c1_48, %c0_49, %c0_50] : memref<2x2x128xf32, #tpu.memory_space<vmem>>, vector<1x2x128xf32>
    %99 = vector.shape_cast %98 : vector<1x2x128xf32> to vector<2x128xf32>
    %100 = vector.shape_cast %85 : vector<2x128xf32> to vector<1x2x128xf32>
    tpu.vector_store %arg17[%c1_48, %c0_49, %c0_50], %100 {strides = array<i32>} : memref<2x2x128xf32, #tpu.memory_space<vmem>>, vector<1x2x128xf32>,
    return
  }
  func.func @transform_0(%arg0: i32, %arg1: memref<2xi32, #tpu.memory_space<smem>>) -> (i32, i32) {
    %c0_i32 = arith.constant 0 : i32
    %c0_i32_0 = arith.constant 0 : i32
    %c0_i32_1 = arith.constant 0 : i32
    return %c0_i32, %c0_i32_0 : i32, i32
  }
  func.func @transform_1(%arg0: i32, %arg1: memref<2xi32, #tpu.memory_space<smem>>) -> (i32, i32) {
    %c0_i32 = arith.constant 0 : i32
    %c0_i32_0 = arith.constant 0 : i32
    %c0_i32_1 = arith.constant 0 : i32
    return %c0_i32, %c0_i32_0 : i32, i32
  }
  func.func @transform_2(%arg0: i32, %arg1: memref<2xi32, #tpu.memory_space<smem>>) -> (i32, i32) {
    %c0_i32 = arith.constant 0 : i32
    %c0_i32_0 = arith.constant 0 : i32
    %c0_i32_1 = arith.constant 0 : i32
    return %c0_i32, %c0_i32_0 : i32, i32
  }
  func.func @transform_3(%arg0: i32, %arg1: memref<2xi32, #tpu.memory_space<smem>>) -> (i32, i32, i32) {
    %c0_i32 = arith.constant 0 : i32
    %c0_i32_0 = arith.constant 0 : i32
    %c0_i32_1 = arith.constant 0 : i32
    %c0_i32_2 = arith.constant 0 : i32
    return %c0_i32, %c0_i32_0, %c0_i32_1 : i32, i32, i32
  }
  func.func @transform_4(%arg0: i32, %arg1: memref<2xi32, #tpu.memory_space<smem>>) -> (i32, i32) {
    %c0_i32 = arith.constant 0 : i32
    %c0_i32_0 = arith.constant 0 : i32
    %c0_i32_1 = arith.constant 0 : i32
    return %c0_i32, %c0_i32_0 : i32, i32
  }
  func.func @transform_5(%arg0: i32, %arg1: memref<2xi32, #tpu.memory_space<smem>>) -> (i32, i32) {
    %c0_i32 = arith.constant 0 : i32
    %c0_i32_0 = arith.constant 0 : i32
    %c0_i32_1 = arith.constant 0 : i32
    return %c0_i32, %c0_i32_0 : i32, i32
  }
  func.func @transform_6(%arg0: i32, %arg1: memref<2xi32, #tpu.memory_space<smem>>) -> (i32, i32) {
    %c0_i32 = arith.constant 0 : i32
    %c0_i32_0 = arith.constant 0 : i32
    %c0_i32_1 = arith.constant 0 : i32
    return %c0_i32, %c0_i32_0 : i32, i32
  }
  func.func @transform_7(%arg0: i32, %arg1: memref<2xi32, #tpu.memory_space<smem>>) -> (i32, i32, i32) {
    %c0_i32 = arith.constant 0 : i32
    %c0_i32_0 = arith.constant 0 : i32
    %c0_i32_1 = arith.constant 0 : i32
    %c0_i32_2 = arith.constant 0 : i32
    return %c0_i32, %c0_i32_0, %c0_i32_1 : i32, i32, i32
  }
  func.func @transform_8(%arg0: i32, %arg1: memref<2xi32, #tpu.memory_space<smem>>) -> (i32, i32) {
    %c0_i32 = arith.constant 0 : i32
    %c0_i32_0 = arith.constant 0 : i32
    %c0_i32_1 = arith.constant 0 : i32
    return %c0_i32, %c0_i32_0 : i32, i32
  }
  func.func @transform_9(%arg0: i32, %arg1: memref<2xi32, #tpu.memory_space<smem>>) -> (i32, i32) {
    %c0_i32 = arith.constant 0 : i32
    %c0_i32_0 = arith.constant 0 : i32
    %c0_i32_1 = arith.constant 0 : i32
    return %c0_i32, %c0_i32_0 : i32, i32
  }
  func.func @transform_10(%arg0: i32, %arg1: memref<2xi32, #tpu.memory_space<smem>>) -> (i32, i32) {
    %c0_i32 = arith.constant 0 : i32
    %c0_i32_0 = arith.constant 0 : i32
    %c0_i32_1 = arith.constant 0 : i32
    return %c0_i32, %c0_i32_0 : i32, i32
  }
  func.func @transform_11(%arg0: i32, %arg1: memref<2xi32, #tpu.memory_space<smem>>) -> (i32, i32) {
    %c0_i32 = arith.constant 0 : i32
    %c0_i32_0 = arith.constant 0 : i32
    %c0_i32_1 = arith.constant 0 : i32
    return %c0_i32, %c0_i32_0 : i32, i32
  }
  func.func @transform_12(%arg0: i32, %arg1: memref<2xi32, #tpu.memory_space<smem>>) -> (i32, i32) {
    %c0_i32 = arith.constant 0 : i32
    %c0_i32_0 = arith.constant 0 : i32
    %c0_i32_1 = arith.constant 0 : i32
    return %c0_i32, %c0_i32_0 : i32, i32
  }
  func.func @transform_13(%arg0: i32, %arg1: memref<2xi32, #tpu.memory_space<smem>>) -> (i32, i32) {
    %c0_i32 = arith.constant 0 : i32
    %c0_i32_0 = arith.constant 0 : i32
    %c0_i32_1 = arith.constant 0 : i32
    return %c0_i32, %c0_i32_0 : i32, i32
  }
  func.func @transform_14(%arg0: i32, %arg1: memref<2xi32, #tpu.memory_space<smem>>) -> (i32, i32) {
    %c0_i32 = arith.constant 0 : i32
    %c0_i32_0 = arith.constant 0 : i32
    %c0_i32_1 = arith.constant 0 : i32
    return %c0_i32, %c0_i32_0 : i32, i32
  }
  func.func @transform_15(%arg0: i32, %arg1: memref<2xi32, #tpu.memory_space<smem>>) -> (i32, i32, i32) {
    %c0_i32 = arith.constant 0 : i32
    %c0_i32_0 = arith.constant 0 : i32
    %c0_i32_1 = arith.constant 0 : i32
    %c0_i32_2 = arith.constant 0 : i32
    return %c0_i32, %c0_i32_0, %c0_i32_1 : i32, i32, i32
  }
}

</mosaic_0001>

<llo_original>
// kernel: tpu_custom_call.1
$region0: #{tpu_custom_call.1}
  #allocation0 [shape = 'u32[]', space=smem, size = 0x4, offset = 0x4, fixed_abs, tag = 'smem constant byte address 0x4 - core index']
  #allocation1 [shape = 'u32[144,128]{1,0:T(1,128)}', space=vmem, size = 0x12000, scoped, tag = 'internal scratch']
  #allocation2 [shape = 's32[1]{0}', space=sflag, size = 0x4, scoped, tag = 'scoped memory for tpu_custom_call.1']
  #allocation3 [shape = 'u8[512]{0}', space=smem, size = 0x200, scoped, tag = 'prefetched SMEM operand 0']
  %s0 = inlined_call_operand.hbm [shape: s32[2], index: 0, kind: input, shape index: {}]
  %s1 = inlined_call_operand.vmem [shape: f32[50,16], index: 1, kind: input, shape index: {}]
  %s2 = inlined_call_operand.vmem [shape: f32[2,128], index: 2, kind: input, shape index: {}]
  %s3 = inlined_call_operand.hbm [shape: f32[2,128], index: 3, kind: input, shape index: {}]
  %s4 = inlined_call_operand.vmem [shape: f32[2,16,24], index: 4, kind: input, shape index: {}]
  %s5 = inlined_call_operand.vmem [shape: bf16[128,32], index: 5, kind: input, shape index: {}]
  %s6 = inlined_call_operand.hbm [shape: bf16[24,32], index: 6, kind: input, shape index: {}]
  %s7 = inlined_call_operand.hbm [shape: f32[1,32], index: 7, kind: input, shape index: {}]
  %s8 = inlined_call_operand.hbm [shape: f32[1,1,32], index: 8, kind: input, shape index: {}]
  %s9 = inlined_call_operand.vmem [shape: bf16[16,512], index: 9, kind: input, shape index: {}]
  %s10 = inlined_call_operand.hbm [shape: bf16[128,512], index: 10, kind: input, shape index: {}]
  %s11 = inlined_call_operand.vmem [shape: bf16[24,512], index: 11, kind: input, shape index: {}]
  %s12 = inlined_call_operand.vmem [shape: f32[1,512], index: 12, kind: input, shape index: {}]
  %s13 = inlined_call_operand.vmem [shape: bf16[128,128], index: 13, kind: input, shape index: {}]
  %s14 = inlined_call_operand.vmem [shape: f32[1,128], index: 14, kind: input, shape index: {}]
  %s15 = inlined_call_operand.hbm [shape: f32[2,128], index: 15, kind: output, shape index: {0}]
  %s16 = inlined_call_operand.hbm [shape: f32[2,2,128], index: 16, kind: output, shape index: {1}]
  %17 = xla_tuple %s15, %s16
  %s18 = sld [smem:[#allocation0]]
  $region94: #{tpu_custom_call.1} parent=0
    _
  %s20 = ssub.s32 1, %s18
  %s21 = scalar_select 0, %s20, %s18
  %23 = dma.hbm_to_smem %s0, 16, [#allocation3], [#allocation2]
  %24 = dma.done [#allocation2], 16
  %25 = sfence
  $region1: #{tpu_custom_call.1} parent=0
    #allocation4 [shape = 'u8[1024]{0}', space=vmem, size = 0x400, scoped, tag = 'input window, operand 3, single buffered']
    #allocation5 [shape = 's32[1]{0}', space=sflag, size = 0x4, scoped, tag = 'scoped memory for tpu_custom_call.1']
    #allocation6 [shape = 's32[1]{0}', space=sflag, size = 0x4, scoped, tag = 'scoped memory for tpu_custom_call.1']
    #allocation7 [shape = 'u8[6144]{0}', space=vmem, size = 0x1800, scoped, tag = 'input window, operand 6, single buffered']
    #allocation8 [shape = 's32[1]{0}', space=sflag, size = 0x4, scoped, tag = 'scoped memory for tpu_custom_call.1']
    #allocation9 [shape = 'u8[512]{0}', space=vmem, size = 0x400, scoped, tag = 'input window, operand 7, single buffered']
    #allocation10 [shape = 'u8[512]{0}', space=vmem, size = 0x400, scoped, tag = 'input window, operand 8, single buffered']
    #allocation11 [shape = 's32[1]{0}', space=sflag, size = 0x4, scoped, tag = 'scoped memory for tpu_custom_call.1']
    #allocation12 [shape = 'u8[131072]{0}', space=vmem, size = 0x20000, scoped, tag = 'input window, operand 10, single buffered']
    #allocation13 [shape = 'u8[1024]{0}', space=vmem, size = 0x400, scoped, tag = 'output window, operand 0, single buffered']
    #allocation14 [shape = 'u8[2048]{0}', space=vmem, size = 0x800, scoped, tag = 'output window, operand 1, single buffered']
    #allocation15 [shape = 's32[1]{0}', space=sflag, size = 0x4, scoped, tag = 'scoped memory for tpu_custom_call.1']
    %26 = vsyncpa [#allocation5], 0
    %27 = vsyncpa [#allocation8], 0
    %28 = vsyncpa [#allocation11], 0
    %29 = vsyncpa [#allocation6], 0
    %30 = vsyncpa [#allocation15], 0
    // Predicated region
    $region2: #{tpu_custom_call.1} parent=1 // pred_check
      _
    $region3: #{tpu_custom_call.1} parent=1 // pred_check_branch
      %32 = sbr.rel (0) target = $region5
    $region4: #{tpu_custom_call.1} parent=1 // pred_region
      _
    $region5: #{tpu_custom_call.1} parent=1 // pred_fallthru
      _
    // Predicated region
    $region6: #{tpu_custom_call.1} parent=1 // pred_check
      _
    $region7: #{tpu_custom_call.1} parent=1 // pred_check_branch
      %34 = sbr.rel (0) target = $region9
    $region8: #{tpu_custom_call.1} parent=1 // pred_region
      _
    $region9: #{tpu_custom_call.1} parent=1 // pred_fallthru
      _
    // Predicated region
    $region10: #{tpu_custom_call.1} parent=1 // pred_check
      _
    $region11: #{tpu_custom_call.1} parent=1 // pred_check_branch
      %36 = sbr.rel (0) target = $region13
    $region12: #{tpu_custom_call.1} parent=1 // pred_region
      %s38 = ssub.s32 32, 32
      %39 = vsyncadd [#allocation5], %s38
      %s41 = sshll.u32 [#allocation4], 4
      %s42 = int_to_ptr.vmem [resolvable:$true] %s41
      %44 = dma.hbm_to_vmem [thread:$0]  %s3, 32, %s42, [#allocation5]
    $region13: #{tpu_custom_call.1} parent=1 // pred_fallthru
      _
    // Predicated region
    $region14: #{tpu_custom_call.1} parent=1 // pred_check
      _
    $region15: #{tpu_custom_call.1} parent=1 // pred_check_branch
      %46 = sbr.rel (0) target = $region17
    $region16: #{tpu_custom_call.1} parent=1 // pred_region
      _
    $region17: #{tpu_custom_call.1} parent=1 // pred_fallthru
      _
    // Predicated region
    $region18: #{tpu_custom_call.1} parent=1 // pred_check
      _
    $region19: #{tpu_custom_call.1} parent=1 // pred_check_branch
      %48 = sbr.rel (0) target = $region21
    $region20: #{tpu_custom_call.1} parent=1 // pred_region
      _
    $region21: #{tpu_custom_call.1} parent=1 // pred_fallthru
      _
    // Predicated region
    $region22: #{tpu_custom_call.1} parent=1 // pred_check
      _
    $region23: #{tpu_custom_call.1} parent=1 // pred_check_branch
      %50 = sbr.rel (0) target = $region25
    $region24: #{tpu_custom_call.1} parent=1 // pred_region
      %s52 = ssub.s32 192, 192
      %53 = vsyncadd [#allocation8], %s52
      %s54 = sshll.u32 [#allocation7], 4
      %s55 = int_to_ptr.vmem [resolvable:$true] %s54
      %60 = dma.hbm_to_vmem [thread:$0]  %s6, 192, %s55, [#allocation8], 64, 64, 4
    $region25: #{tpu_custom_call.1} parent=1 // pred_fallthru
      _
    // Predicated region
    $region26: #{tpu_custom_call.1} parent=1 // pred_check
      _
    $region27: #{tpu_custom_call.1} parent=1 // pred_check_branch
      %62 = sbr.rel (0) target = $region29
    $region28: #{tpu_custom_call.1} parent=1 // pred_region
      %s64 = ssub.s32 16, 16
      %65 = vsyncadd [#allocation8], %s64
      %s67 = sshll.u32 [#allocation9], 4
      %s68 = int_to_ptr.vmem [resolvable:$true] %s67
      %70 = dma.hbm_to_vmem [thread:$0]  %s7, 16, %s68, [#allocation8]
    $region29: #{tpu_custom_call.1} parent=1 // pred_fallthru
      _
    // Predicated region
    $region30: #{tpu_custom_call.1} parent=1 // pred_check
      _
    $region31: #{tpu_custom_call.1} parent=1 // pred_check_branch
      %72 = sbr.rel (0) target = $region33
    $region32: #{tpu_custom_call.1} parent=1 // pred_region
      %s74 = ssub.s32 16, 16
      %75 = vsyncadd [#allocation11], %s74
      %s77 = sshll.u32 [#allocation10], 4
      %s78 = int_to_ptr.vmem [resolvable:$true] %s77
      %80 = dma.hbm_to_vmem [thread:$0]  %s8, 16, %s78, [#allocation11]
    $region33: #{tpu_custom_call.1} parent=1 // pred_fallthru
      _
    // Predicated region
    $region34: #{tpu_custom_call.1} parent=1 // pred_check
      _
    $region35: #{tpu_custom_call.1} parent=1 // pred_check_branch
      %82 = sbr.rel (0) target = $region37
    $region36: #{tpu_custom_call.1} parent=1 // pred_region
      _
    $region37: #{tpu_custom_call.1} parent=1 // pred_fallthru
      _
    // Predicated region
    $region38: #{tpu_custom_call.1} parent=1 // pred_check
      _
    $region39: #{tpu_custom_call.1} parent=1 // pred_check_branch
      %84 = sbr.rel (0) target = $region41
    $region40: #{tpu_custom_call.1} parent=1 // pred_region
      %s86 = ssub.s32 4096, 4096
      %87 = vsyncadd [#allocation11], %s86
      %s88 = sshll.u32 [#allocation12], 4
      %s89 = int_to_ptr.vmem [resolvable:$true] %s88
      %94 = dma.hbm_to_vmem [thread:$0]  %s10, 4096, %s89, [#allocation11], 256, 256, 16
    $region41: #{tpu_custom_call.1} parent=1 // pred_fallthru
      _
    // Predicated region
    $region42: #{tpu_custom_call.1} parent=1 // pred_check
      _
    $region43: #{tpu_custom_call.1} parent=1 // pred_check_branch
      %96 = sbr.rel (0) target = $region45
    $region44: #{tpu_custom_call.1} parent=1 // pred_region
      _
    $region45: #{tpu_custom_call.1} parent=1 // pred_fallthru
      _
    // Predicated region
    $region46: #{tpu_custom_call.1} parent=1 // pred_check
      _
    $region47: #{tpu_custom_call.1} parent=1 // pred_check_branch
      %98 = sbr.rel (0) target = $region49
    $region48: #{tpu_custom_call.1} parent=1 // pred_region
      _
    $region49: #{tpu_custom_call.1} parent=1 // pred_fallthru
      _
    // Predicated region
    $region50: #{tpu_custom_call.1} parent=1 // pred_check
      _
    $region51: #{tpu_custom_call.1} parent=1 // pred_check_branch
      %100 = sbr.rel (0) target = $region53
    $region52: #{tpu_custom_call.1} parent=1 // pred_region
      _
    $region53: #{tpu_custom_call.1} parent=1 // pred_fallthru
      _
    // Predicated region
    $region54: #{tpu_custom_call.1} parent=1 // pred_check
      _
    $region55: #{tpu_custom_call.1} parent=1 // pred_check_branch
      %102 = sbr.rel (0) target = $region57
    $region56: #{tpu_custom_call.1} parent=1 // pred_region
      _
    $region57: #{tpu_custom_call.1} parent=1 // pred_fallthru
      _
    // Predicated region
    $region58: #{tpu_custom_call.1} parent=1 // pred_check
      _
    $region59: #{tpu_custom_call.1} parent=1 // pred_check_branch
      %104 = sbr.rel (0) target = $region61
    $region60: #{tpu_custom_call.1} parent=1 // pred_region
      %105 = dma.done [#allocation5], 32
    $region61: #{tpu_custom_call.1} parent=1 // pred_fallthru
      _
    // Predicated region
    $region62: #{tpu_custom_call.1} parent=1 // pred_check
      _
    $region63: #{tpu_custom_call.1} parent=1 // pred_check_branch
      %107 = sbr.rel (0) target = $region65
    $region64: #{tpu_custom_call.1} parent=1 // pred_region
      %108 = dma.done [#allocation8], 192
    $region65: #{tpu_custom_call.1} parent=1 // pred_fallthru
      _
    // Predicated region
    $region66: #{tpu_custom_call.1} parent=1 // pred_check
      _
    $region67: #{tpu_custom_call.1} parent=1 // pred_check_branch
      %110 = sbr.rel (0) target = $region69
    $region68: #{tpu_custom_call.1} parent=1 // pred_region
      %111 = dma.done [#allocation8], 16
    $region69: #{tpu_custom_call.1} parent=1 // pred_fallthru
      _
    // Predicated region
    $region70: #{tpu_custom_call.1} parent=1 // pred_check
      _
    $region71: #{tpu_custom_call.1} parent=1 // pred_check_branch
      %113 = sbr.rel (0) target = $region73
    $region72: #{tpu_custom_call.1} parent=1 // pred_region
      %114 = dma.done [#allocation11], 16
    $region73: #{tpu_custom_call.1} parent=1 // pred_fallthru
      _
    // Predicated region
    $region74: #{tpu_custom_call.1} parent=1 // pred_check
      _
    $region75: #{tpu_custom_call.1} parent=1 // pred_check_branch
      %116 = sbr.rel (0) target = $region77
    $region76: #{tpu_custom_call.1} parent=1 // pred_region
      %117 = dma.done [#allocation11], 4096
    $region77: #{tpu_custom_call.1} parent=1 // pred_fallthru
      _
    %v119 = vld [vmem:[%s4] sm:$0xff]
    %v120 = vld [vmem:[%s4 + $0x8] sm:$0xff]
    %v121 = vld [vmem:[%s4 + $0x10] sm:$0xff]
    %v122 = vld [vmem:[%s4 + $0x18] sm:$0xff]
    %v123 = vpack.c.bf16 %v120, %v119
    %v124 = vpack.c.bf16 %v122, %v121
    %v125 = vld [vmem:[%s2] sm:$0x3]
    %v126 = vpack.c.bf16 %v125, %v125
    %s127 = sld [smem:[#allocation3]]
    %s128 = scalar_lea.vmem %s1, %s127
    %v129 = vld [vmem:[%s128] sm:$0x1]
    %s130 = sld [smem:[#allocation3 + $0x1]]
    %s131 = scalar_lea.vmem %s1, %s130
    %v132 = vld [vmem:[%s131] sm:$0x1]
    %v134 = vrot.slane %v132, 7
    %vm136 = vcmask 1040384
    %v137 = vsel %vm136, %v129, %v134
    %v138 = vpack.c.bf16 %v137, %v137
    %v139 = vld [vmem:[#allocation7] sm:$0xf]
    %v140 = vld [vmem:[#allocation7 + $0x4] sm:$0xf]
    %v141 = vld [vmem:[#allocation7 + $0x8] sm:$0xf]
    %v145 = vunpack.c.l.b16 %v139
    %v146 = vunpack.c.l.b16 %v140
    %v147 = vunpack.c.l.b16 %v141
    %v148 = vpack.c.b16 %v146, %v145
    %v149 = vpack.c.b16 %v147, %v147
    %vm151 = vcmask 195584
    %v153 = vsel %vm151, %v123, 0
    %v156 = vsel %vm151, %v124, 0
    %vm158 = vcmask 1043456
    %v160 = vsel %vm158, %v149, 0
    %162 = vmatprep.subr.bf16.mxu0 0
    %163 = vmatpush1.bf16.msra.mxu0 %v148
    %164 = vmatprep.subr.bf16.mxu0 0
    %165 = vmatpush1.bf16.msra.mxu0 %v160
    %166 = vmatprep.subr.bf16.mxu0 0
    %167 = vmatpush1.bf16.msra.mxu0 0
    %168 = vmatprep.subr.bf16.mxu0 0
    %169 = vmatpush1.bf16.msra.mxu0 0
    %170 = vmatprep.subr.bf16.mxu0 0
    %171 = vmatpush1.bf16.msra.mxu0 0
    %172 = vmatprep.subr.bf16.mxu0 0
    %173 = vmatpush1.bf16.msra.mxu0 0
    %174 = vmatprep.subr.bf16.mxu0 0
    %175 = vmatpush1.bf16.msra.mxu0 0
    %176 = vmatprep.subr.bf16.mxu0 0
    %177 = vmatpush1.bf16.msra.mxu0 0
    %178 = vmatprep.subr.bf16.mxu0 0
    %179 = vmatpush1.bf16.msra.mxu0 0
    %180 = vmatprep.subr.bf16.mxu0 0
    %181 = vmatpush1.bf16.msra.mxu0 0
    %182 = vmatprep.subr.bf16.mxu0 0
    %183 = vmatpush1.bf16.msra.mxu0 0
    %184 = vmatprep.subr.bf16.mxu0 0
    %185 = vmatpush1.bf16.msra.mxu0 0
    %186 = vmatprep.subr.bf16.mxu0 0
    %187 = vmatpush1.bf16.msra.mxu0 0
    %188 = vmatprep.subr.bf16.mxu0 0
    %189 = vmatpush1.bf16.msra.mxu0 0
    %190 = vmatprep.subr.bf16.mxu0 0
    %191 = vmatpush1.bf16.msra.mxu0 0
    %192 = vmatprep.subr.bf16.mxu0 0
    %193 = vmatpush1.bf16.msra.mxu0 0
    %194 = vmatprep.mubr.bf16.mxu0 0
    %195 = vmatmul.mubr.bf16.gmra.mrb[0].mxu0 %v153
    %v196 = vpop.f32.mrb[0].mxu0
    %v197 = vadd.f32 0.0, %v196
    %v198 = vpop.f32.mrb[0].mxu0
    %v199 = vpop.f32.mrb[0].mxu0
    %v200 = vadd.f32 0.0, %v199
    %v201 = vpop.f32.mrb[0].mxu0
    %202 = vmatprep.mubr.bf16.mxu0 0
    %203 = vmatmul.mubr.bf16.gmra.mrb[0].mxu0 %v156
    %v204 = vpop.f32.mrb[0].mxu0
    %v205 = vadd.f32 0.0, %v204
    %v206 = vpop.f32.mrb[0].mxu0
    %v207 = vpop.f32.mrb[0].mxu0
    %v208 = vadd.f32 0.0, %v207
    %v209 = vpop.f32.mrb[0].mxu0
    %210 = vdwg.mxu0
    %v211 = vld [vmem:[%s5] sm:$0xf]
    %v212 = vld [vmem:[%s5 + $0x4] sm:$0xf]
    %v213 = vld [vmem:[%s5 + $0x8] sm:$0xf]
    %v214 = vld [vmem:[%s5 + $0xc] sm:$0xf]
    %v215 = vld [vmem:[%s5 + $0x10] sm:$0xf]
    %v216 = vld [vmem:[%s5 + $0x14] sm:$0xf]
    %v217 = vld [vmem:[%s5 + $0x18] sm:$0xf]
    %v218 = vld [vmem:[%s5 + $0x1c] sm:$0xf]
    %v219 = vld [vmem:[%s5 + $0x20] sm:$0xf]
    %v220 = vld [vmem:[%s5 + $0x24] sm:$0xf]
    %v221 = vld [vmem:[%s5 + $0x28] sm:$0xf]
    %v222 = vld [vmem:[%s5 + $0x2c] sm:$0xf]
    %v223 = vld [vmem:[%s5 + $0x30] sm:$0xf]
    %v224 = vld [vmem:[%s5 + $0x34] sm:$0xf]
    %v225 = vld [vmem:[%s5 + $0x38] sm:$0xf]
    %v226 = vld [vmem:[%s5 + $0x3c] sm:$0xf]
    %v227 = vld [vmem:[#allocation9] sm:$0x1]
    %v229 = vlaneseq
    %v230 = vshrl.u32 %v229, 7
    %v231 = vsub.s32 0, %v230
    %v232 = vrot.slane %v227, %v231
    %v250 = vunpack.c.l.b16 %v211
    %v251 = vunpack.c.l.b16 %v212
    %v252 = vunpack.c.l.b16 %v213
    %v253 = vunpack.c.l.b16 %v214
    %v254 = vunpack.c.l.b16 %v215
    %v255 = vunpack.c.l.b16 %v216
    %v256 = vunpack.c.l.b16 %v217
    %v257 = vunpack.c.l.b16 %v218
    %v258 = vunpack.c.l.b16 %v219
    %v259 = vunpack.c.l.b16 %v220
    %v260 = vunpack.c.l.b16 %v221
    %v261 = vunpack.c.l.b16 %v222
    %v262 = vunpack.c.l.b16 %v223
    %v263 = vunpack.c.l.b16 %v224
    %v264 = vunpack.c.l.b16 %v225
    %v265 = vunpack.c.l.b16 %v226
    %v266 = vpack.c.b16 %v251, %v250
    %v267 = vpack.c.b16 %v253, %v252
    %v268 = vpack.c.b16 %v255, %v254
    %v269 = vpack.c.b16 %v257, %v256
    %v270 = vpack.c.b16 %v259, %v258
    %v271 = vpack.c.b16 %v261, %v260
    %v272 = vpack.c.b16 %v263, %v262
    %v273 = vpack.c.b16 %v265, %v264
    %282 = vmatprep.subr.bf16.mxu0 0
    %283 = vmatpush1.bf16.msra.mxu0 %v266
    %284 = vmatprep.subr.bf16.mxu0 0
    %285 = vmatpush1.bf16.msra.mxu0 %v267
    %286 = vmatprep.subr.bf16.mxu0 0
    %287 = vmatpush1.bf16.msra.mxu0 %v268
    %288 = vmatprep.subr.bf16.mxu0 0
    %289 = vmatpush1.bf16.msra.mxu0 %v269
    %290 = vmatprep.subr.bf16.mxu0 0
    %291 = vmatpush1.bf16.msra.mxu0 %v270
    %292 = vmatprep.subr.bf16.mxu0 0
    %293 = vmatpush1.bf16.msra.mxu0 %v271
    %294 = vmatprep.subr.bf16.mxu0 0
    %295 = vmatpush1.bf16.msra.mxu0 %v272
    %296 = vmatprep.subr.bf16.mxu0 0
    %297 = vmatpush1.bf16.msra.mxu0 %v273
    %298 = vmatprep.subr.bf16.mxu0 0
    %299 = vmatpush1.bf16.msra.mxu0 0
    %300 = vmatprep.subr.bf16.mxu0 0
    %301 = vmatpush1.bf16.msra.mxu0 0
    %302 = vmatprep.subr.bf16.mxu0 0
    %303 = vmatpush1.bf16.msra.mxu0 0
    %304 = vmatprep.subr.bf16.mxu0 0
    %305 = vmatpush1.bf16.msra.mxu0 0
    %306 = vmatprep.subr.bf16.mxu0 0
    %307 = vmatpush1.bf16.msra.mxu0 0
    %308 = vmatprep.subr.bf16.mxu0 0
    %309 = vmatpush1.bf16.msra.mxu0 0
    %310 = vmatprep.subr.bf16.mxu0 0
    %311 = vmatpush1.bf16.msra.mxu0 0
    %312 = vmatprep.subr.bf16.mxu0 0
    %313 = vmatpush1.bf16.msra.mxu0 0
    %314 = vmatprep.mubr.bf16.mxu0 0
    %315 = vmatmul.mubr.bf16.gmra.mrb[0].mxu0 %v126
    %v316 = vpop.f32.mrb[0].mxu0
    %v317 = vadd.f32 %v232, %v316
    %v318 = vpop.f32.mrb[0].mxu0
    %v319 = vpop.f32.mrb[0].mxu0
    %v320 = vpop.f32.mrb[0].mxu0
    %321 = vdwg.mxu0
    %v324 = vunpack.c.l.s4 1966171168
    %v325 = vunpack.c.0.s8 %v324
    %v326 = vlaneseq
    %v327 = vshrl.u32 %v326, 7
    %v328 = vsub.s32 %v325, %v327
    %v329 = vrot.slane %v317, %v328
    %v330 = vcombine.high %v329, %v329
    %v332 = vunpack.c.l.s4 1966171168
    %v333 = vunpack.c.0.s8 %v332
    %v334 = vlaneseq
    %v335 = vshrl.u32 %v334, 7
    %v336 = vsub.s32 %v333, %v335
    %v337 = vrot.slane %v329, %v336
    %v339 = vunpack.c.l.s4 1966171168
    %v340 = vunpack.c.0.s8 %v339
    %v341 = vlaneseq
    %v342 = vshrl.u32 %v341, 7
    %v343 = vsub.s32 %v340, %v342
    %v344 = vrot.slane %v330, %v343
    %v345 = vlaneseq
    %v346 = vshrl.u32 %v345, 7
    %v347 = vsub.s32 0, %v346
    %v348 = vrot.slane %v337, %v347
    %v349 = vlaneseq
    %v350 = vshrl.u32 %v349, 7
    %v351 = vsub.s32 0, %v350
    %v352 = vrot.slane %v344, %v351
    %v355 = vadd.f32 %v197, %v348
    %v356 = vadd.f32 %v200, %v348
    %v357 = vadd.f32 %v205, %v352
    %v358 = vadd.f32 %v208, %v352
    %v359 = vtanh.pop %v355
    %v360 = vtanh.pop %v356
    %v361 = vtanh.pop %v357
    %v362 = vtanh.pop %v358
    %v363 = vld [vmem:[#allocation10] sm:$0x1]
    %v365 = vlaneseq
    %v366 = vshrl.u32 %v365, 7
    %v367 = vsub.s32 0, %v366
    %v368 = vrot.slane %v363, %v367
    %v370 = vmul.f32 %v359, %v368
    %v371 = vmul.f32 %v360, %v368
    %v372 = vmul.f32 %v361, %v368
    %v373 = vmul.f32 %v362, %v368
    %vm374 = vcmask 261120
    %v375 = vsel %vm374, %v370, 0.0
    %376 = vadd.xlane.f32.xlu0 %v375
    %v377 = vpop.xlane.xlu0 %376
    %v378 = vsel %vm374, %v371, 0.0
    %379 = vadd.xlane.f32.xlu0 %v378
    %v380 = vpop.xlane.xlu0 %379
    %v381 = vsel %vm374, %v372, 0.0
    %382 = vadd.xlane.f32.xlu0 %v381
    %v383 = vpop.xlane.xlu0 %382
    %v384 = vsel %vm374, %v373, 0.0
    %385 = vadd.xlane.f32.xlu0 %v384
    %v386 = vpop.xlane.xlu0 %385
    %v387 = vlaneseq
    %v388 = vshrl.u32 %v387, 7
    %v389 = vadd.s32 %v388, 8
    %vm390 = vcmp.lt.s32.totalorder %v388, 10
    %vm391 = vcmp.lt.s32.totalorder %v389, 10
    %v392 = vsel %vm390, 1, 0
    %v393 = vsel %vm391, 1, 0
    %vm394 = vcmp.eq.s32.totalorder %v392, 1
    %vm395 = vcmp.eq.s32.totalorder %v393, 1
    %v396 = vsel %vm394, %v377, -1e+30
    %v397 = vsel %vm395, %v380, -1e+30
    %v398 = vsel %vm394, %v383, -1e+30
    %v399 = vsel %vm395, %v386, -1e+30
    %v400 = vmax.f32 %v396, %v397
    %v401 = vrot.slane %v400, 4
    %v402 = vmax.f32 %v400, %v401
    %v403 = vrot.slane %v402, 2
    %v404 = vmax.f32 %v402, %v403
    %v405 = vrot.slane %v404, 1
    %v406 = vmax.f32 %v404, %v405
    %v407 = vmax.f32 %v398, %v399
    %v408 = vrot.slane %v407, 4
    %v409 = vmax.f32 %v407, %v408
    %v410 = vrot.slane %v409, 2
    %v411 = vmax.f32 %v409, %v410
    %v412 = vrot.slane %v411, 1
    %v413 = vmax.f32 %v411, %v412
    %v414 = vsub.f32 %v396, %v406
    %v415 = vsub.f32 %v397, %v406
    %v416 = vsub.f32 %v398, %v413
    %v417 = vsub.f32 %v399, %v413
    %v418 = vmul.f32 %v414, 1.442695
    %v419 = vpow.pop %v418
    %v420 = vmul.f32 %v415, 1.442695
    %v421 = vpow.pop %v420
    %v422 = vmul.f32 %v416, 1.442695
    %v423 = vpow.pop %v422
    %v424 = vmul.f32 %v417, 1.442695
    %v425 = vpow.pop %v424
    %v426 = vadd.f32 %v419, %v421
    %v427 = vrot.slane %v426, 4
    %v428 = vadd.f32 %v426, %v427
    %v429 = vrot.slane %v428, 2
    %v430 = vadd.f32 %v428, %v429
    %v431 = vrot.slane %v430, 1
    %v432 = vadd.f32 %v430, %v431
    %v433 = vadd.f32 %v423, %v425
    %v434 = vrot.slane %v433, 4
    %v435 = vadd.f32 %v433, %v434
    %v436 = vrot.slane %v435, 2
    %v437 = vadd.f32 %v435, %v436
    %v438 = vrot.slane %v437, 1
    %v439 = vadd.f32 %v437, %v438
    %v440 = vrcp.pop %v432
    %v441 = vrcp.pop %v439
    %v442 = vmul.f32 %v419, %v440
    %v443 = vmul.f32 %v421, %v440
    %v444 = vmul.f32 %v423, %v441
    %v445 = vmul.f32 %v425, %v441
    %v446 = vmul.f32 %v442, %v119
    %v447 = vmul.f32 %v443, %v120
    %v448 = vmul.f32 %v444, %v121
    %v449 = vmul.f32 %v445, %v122
    %v450 = vsel %vm151, %v446, 0.0
    %v451 = vsel %vm151, %v447, 0.0
    %v452 = vadd.f32 %v450, %v451
    %v453 = vrot.slane %v452, 4
    %v454 = vadd.f32 %v452, %v453
    %v455 = vrot.slane %v454, 2
    %v456 = vadd.f32 %v454, %v455
    %v457 = vrot.slane %v456, 1
    %v458 = vadd.f32 %v456, %v457
    %v459 = vsel %vm151, %v448, 0.0
    %v460 = vsel %vm151, %v449, 0.0
    %v461 = vadd.f32 %v459, %v460
    %v462 = vrot.slane %v461, 4
    %v463 = vadd.f32 %v461, %v462
    %v464 = vrot.slane %v463, 2
    %v465 = vadd.f32 %v463, %v464
    %v466 = vrot.slane %v465, 1
    %v467 = vadd.f32 %v465, %v466
    %v468 = vld [vmem:[%s9] sm:$0xff]
    %v469 = vld [vmem:[%s9 + $0x8] sm:$0xff]
    %v470 = vld [vmem:[%s9 + $0x10] sm:$0xff]
    %v471 = vld [vmem:[%s9 + $0x18] sm:$0xff]
    %v472 = vld [vmem:[#allocation12] sm:$0xff]
    %v473 = vld [vmem:[#allocation12 + $0x8] sm:$0xff]
    %v474 = vld [vmem:[#allocation12 + $0x10] sm:$0xff]
    %v475 = vld [vmem:[#allocation12 + $0x18] sm:$0xff]
    %v476 = vld [vmem:[#allocation12 + $0x20] sm:$0xff]
    %v477 = vld [vmem:[#allocation12 + $0x28] sm:$0xff]
    %v478 = vld [vmem:[#allocation12 + $0x30] sm:$0xff]
    %v479 = vld [vmem:[#allocation12 + $0x38] sm:$0xff]
    %v480 = vld [vmem:[#allocation12 + $0x40] sm:$0xff]
    %v481 = vld [vmem:[#allocation12 + $0x48] sm:$0xff]
    %v482 = vld [vmem:[#allocation12 + $0x50] sm:$0xff]
    %v483 = vld [vmem:[#allocation12 + $0x58] sm:$0xff]
    %v484 = vld [vmem:[#allocation12 + $0x60] sm:$0xff]
    %v485 = vld [vmem:[#allocation12 + $0x68] sm:$0xff]
    %v486 = vld [vmem:[#allocation12 + $0x70] sm:$0xff]
    %v487 = vld [vmem:[#allocation12 + $0x78] sm:$0xff]
    %v488 = vld [vmem:[#allocation12 + $0x80] sm:$0xff]
    %v489 = vld [vmem:[#allocation12 + $0x88] sm:$0xff]
    %v490 = vld [vmem:[#allocation12 + $0x90] sm:$0xff]
    %v491 = vld [vmem:[#allocation12 + $0x98] sm:$0xff]
    %v492 = vld [vmem:[#allocation12 + $0xa0] sm:$0xff]
    %v493 = vld [vmem:[#allocation12 + $0xa8] sm:$0xff]
    %v494 = vld [vmem:[#allocation12 + $0xb0] sm:$0xff]
    %v495 = vld [vmem:[#allocation12 + $0xb8] sm:$0xff]
    %v496 = vld [vmem:[#allocation12 + $0xc0] sm:$0xff]
    %v497 = vld [vmem:[#allocation12 + $0xc8] sm:$0xff]
    %v498 = vld [vmem:[#allocation12 + $0xd0] sm:$0xff]
    %v499 = vld [vmem:[#allocation12 + $0xd8] sm:$0xff]
    %v500 = vld [vmem:[#allocation12 + $0xe0] sm:$0xff]
    %v501 = vld [vmem:[#allocation12 + $0xe8] sm:$0xff]
    %v502 = vld [vmem:[#allocation12 + $0xf0] sm:$0xff]
    %v503 = vld [vmem:[#allocation12 + $0xf8] sm:$0xff]
    %v536 = vunpack.c.l.b16 %v472
    %v537 = vunpack.c.h.b16 %v472
    %v538 = vunpack.c.l.b16 %v473
    %v539 = vunpack.c.h.b16 %v473
    %v540 = vunpack.c.l.b16 %v474
    %v541 = vunpack.c.h.b16 %v474
    %v542 = vunpack.c.l.b16 %v475
    %v543 = vunpack.c.h.b16 %v475
    %v544 = vunpack.c.l.b16 %v476
    %v545 = vunpack.c.h.b16 %v476
    %v546 = vunpack.c.l.b16 %v477
    %v547 = vunpack.c.h.b16 %v477
    %v548 = vunpack.c.l.b16 %v478
    %v549 = vunpack.c.h.b16 %v478
    %v550 = vunpack.c.l.b16 %v479
    %v551 = vunpack.c.h.b16 %v479
    %v552 = vunpack.c.l.b16 %v480
    %v553 = vunpack.c.h.b16 %v480
    %v554 = vunpack.c.l.b16 %v481
    %v555 = vunpack.c.h.b16 %v481
    %v556 = vunpack.c.l.b16 %v482
    %v557 = vunpack.c.h.b16 %v482
    %v558 = vunpack.c.l.b16 %v483
    %v559 = vunpack.c.h.b16 %v483
    %v560 = vunpack.c.l.b16 %v484
    %v561 = vunpack.c.h.b16 %v484
    %v562 = vunpack.c.l.b16 %v485
    %v563 = vunpack.c.h.b16 %v485
    %v564 = vunpack.c.l.b16 %v486
    %v565 = vunpack.c.h.b16 %v486
    %v566 = vunpack.c.l.b16 %v487
    %v567 = vunpack.c.h.b16 %v487
    %v568 = vunpack.c.l.b16 %v488
    %v569 = vunpack.c.h.b16 %v488
    %v570 = vunpack.c.l.b16 %v489
    %v571 = vunpack.c.h.b16 %v489
    %v572 = vunpack.c.l.b16 %v490
    %v573 = vunpack.c.h.b16 %v490
    %v574 = vunpack.c.l.b16 %v491
    %v575 = vunpack.c.h.b16 %v491
    %v576 = vunpack.c.l.b16 %v492
    %v577 = vunpack.c.h.b16 %v492
    %v578 = vunpack.c.l.b16 %v493
    %v579 = vunpack.c.h.b16 %v493
    %v580 = vunpack.c.l.b16 %v494
    %v581 = vunpack.c.h.b16 %v494
    %v582 = vunpack.c.l.b16 %v495
    %v583 = vunpack.c.h.b16 %v495
    %v584 = vunpack.c.l.b16 %v496
    %v585 = vunpack.c.h.b16 %v496
    %v586 = vunpack.c.l.b16 %v497
    %v587 = vunpack.c.h.b16 %v497
    %v588 = vunpack.c.l.b16 %v498
    %v589 = vunpack.c.h.b16 %v498
    %v590 = vunpack.c.l.b16 %v499
    %v591 = vunpack.c.h.b16 %v499
    %v592 = vunpack.c.l.b16 %v500
    %v593 = vunpack.c.h.b16 %v500
    %v594 = vunpack.c.l.b16 %v501
    %v595 = vunpack.c.h.b16 %v501
    %v596 = vunpack.c.l.b16 %v502
    %v597 = vunpack.c.h.b16 %v502
    %v598 = vunpack.c.l.b16 %v503
    %v599 = vunpack.c.h.b16 %v503
    %v600 = vpack.c.b16 %v540, %v536
    %v601 = vpack.c.b16 %v541, %v537
    %v602 = vpack.c.b16 %v542, %v538
    %v603 = vpack.c.b16 %v543, %v539
    %v604 = vpack.c.b16 %v548, %v544
    %v605 = vpack.c.b16 %v549, %v545
    %v606 = vpack.c.b16 %v550, %v546
    %v607 = vpack.c.b16 %v551, %v547
    %v608 = vpack.c.b16 %v556, %v552
    %v609 = vpack.c.b16 %v557, %v553
    %v610 = vpack.c.b16 %v558, %v554
    %v611 = vpack.c.b16 %v559, %v555
    %v612 = vpack.c.b16 %v564, %v560
    %v613 = vpack.c.b16 %v565, %v561
    %v614 = vpack.c.b16 %v566, %v562
    %v615 = vpack.c.b16 %v567, %v563
    %v616 = vpack.c.b16 %v572, %v568
    %v617 = vpack.c.b16 %v573, %v569
    %v618 = vpack.c.b16 %v574, %v570
    %v619 = vpack.c.b16 %v575, %v571
    %v620 = vpack.c.b16 %v580, %v576
    %v621 = vpack.c.b16 %v581, %v577
    %v622 = vpack.c.b16 %v582, %v578
    %v623 = vpack.c.b16 %v583, %v579
    %v624 = vpack.c.b16 %v588, %v584
    %v625 = vpack.c.b16 %v589, %v585
    %v626 = vpack.c.b16 %v590, %v586
    %v627 = vpack.c.b16 %v591, %v587
    %v628 = vpack.c.b16 %v596, %v592
    %v629 = vpack.c.b16 %v597, %v593
    %v630 = vpack.c.b16 %v598, %v594
    %v631 = vpack.c.b16 %v599, %v595
    %664 = vmatprep.subr.bf16.mxu0 %v601
    %665 = vmatpush1.bf16.msra.mxu0 %v600
    %666 = vmatprep.subr.bf16.mxu0 %v605
    %667 = vmatpush1.bf16.msra.mxu0 %v604
    %668 = vmatprep.subr.bf16.mxu0 %v609
    %669 = vmatpush1.bf16.msra.mxu0 %v608
    %670 = vmatprep.subr.bf16.mxu0 %v613
    %671 = vmatpush1.bf16.msra.mxu0 %v612
    %672 = vmatprep.subr.bf16.mxu0 %v617
    %673 = vmatpush1.bf16.msra.mxu0 %v616
    %674 = vmatprep.subr.bf16.mxu0 %v621
    %675 = vmatpush1.bf16.msra.mxu0 %v620
    %676 = vmatprep.subr.bf16.mxu0 %v625
    %677 = vmatpush1.bf16.msra.mxu0 %v624
    %678 = vmatprep.subr.bf16.mxu0 %v629
    %679 = vmatpush1.bf16.msra.mxu0 %v628
    %680 = vmatprep.subr.bf16.mxu0 0
    %681 = vmatpush1.bf16.msra.mxu0 0
    %682 = vmatprep.subr.bf16.mxu0 0
    %683 = vmatpush1.bf16.msra.mxu0 0
    %684 = vmatprep.subr.bf16.mxu0 0
    %685 = vmatpush1.bf16.msra.mxu0 0
    %686 = vmatprep.subr.bf16.mxu0 0
    %687 = vmatpush1.bf16.msra.mxu0 0
    %688 = vmatprep.subr.bf16.mxu0 0
    %689 = vmatpush1.bf16.msra.mxu0 0
    %690 = vmatprep.subr.bf16.mxu0 0
    %691 = vmatpush1.bf16.msra.mxu0 0
    %692 = vmatprep.subr.bf16.mxu0 0
    %693 = vmatpush1.bf16.msra.mxu0 0
    %694 = vmatprep.subr.bf16.mxu0 0
    %695 = vmatpush1.bf16.msra.mxu0 0
    %696 = vmatprep.mubr.bf16.mxu0 0
    %697 = vmatmul.mubr.bf16.gmra.mrb[0].mxu0 %v126
    %v698 = vpop.f32.mrb[0].mxu0
    %v699 = vadd.f32 0.0, %v698
    %v700 = vpop.f32.mrb[0].mxu0
    %v701 = vadd.f32 0.0, %v700
    %v702 = vpop.f32.mrb[0].mxu0
    %v703 = vpop.f32.mrb[0].mxu0
    %704 = vdwg.mxu0
    %705 = vmatprep.subr.bf16.mxu0 %v603
    %706 = vmatpush1.bf16.msra.mxu0 %v602
    %707 = vmatprep.subr.bf16.mxu0 %v607
    %708 = vmatpush1.bf16.msra.mxu0 %v606
    %709 = vmatprep.subr.bf16.mxu0 %v611
    %710 = vmatpush1.bf16.msra.mxu0 %v610
    %711 = vmatprep.subr.bf16.mxu0 %v615
    %712 = vmatpush1.bf16.msra.mxu0 %v614
    %713 = vmatprep.subr.bf16.mxu0 %v619
    %714 = vmatpush1.bf16.msra.mxu0 %v618
    %715 = vmatprep.subr.bf16.mxu0 %v623
    %716 = vmatpush1.bf16.msra.mxu0 %v622
    %717 = vmatprep.subr.bf16.mxu0 %v627
    %718 = vmatpush1.bf16.msra.mxu0 %v626
    %719 = vmatprep.subr.bf16.mxu0 %v631
    %720 = vmatpush1.bf16.msra.mxu0 %v630
    %721 = vmatprep.subr.bf16.mxu0 0
    %722 = vmatpush1.bf16.msra.mxu0 0
    %723 = vmatprep.subr.bf16.mxu0 0
    %724 = vmatpush1.bf16.msra.mxu0 0
    %725 = vmatprep.subr.bf16.mxu0 0
    %726 = vmatpush1.bf16.msra.mxu0 0
    %727 = vmatprep.subr.bf16.mxu0 0
    %728 = vmatpush1.bf16.msra.mxu0 0
    %729 = vmatprep.subr.bf16.mxu0 0
    %730 = vmatpush1.bf16.msra.mxu0 0
    %731 = vmatprep.subr.bf16.mxu0 0
    %732 = vmatpush1.bf16.msra.mxu0 0
    %733 = vmatprep.subr.bf16.mxu0 0
    %734 = vmatpush1.bf16.msra.mxu0 0
    %735 = vmatprep.subr.bf16.mxu0 0
    %736 = vmatpush1.bf16.msra.mxu0 0
    %737 = vmatprep.mubr.bf16.mxu0 0
    %738 = vmatmul.mubr.bf16.gmra.mrb[0].mxu0 %v126
    %v739 = vpop.f32.mrb[0].mxu0
    %v740 = vadd.f32 0.0, %v739
    %v741 = vpop.f32.mrb[0].mxu0
    %v742 = vadd.f32 0.0, %v741
    %v743 = vpop.f32.mrb[0].mxu0
    %v744 = vpop.f32.mrb[0].mxu0
    %745 = vdwg.mxu0
    %v750 = vunpack.c.l.b16 %v468
    %v751 = vunpack.c.h.b16 %v468
    %v752 = vunpack.c.l.b16 %v469
    %v753 = vunpack.c.h.b16 %v469
    %v754 = vunpack.c.l.b16 %v470
    %v755 = vunpack.c.h.b16 %v470
    %v756 = vunpack.c.l.b16 %v471
    %v757 = vunpack.c.h.b16 %v471
    %v758 = vpack.c.b16 %v754, %v750
    %v759 = vpack.c.b16 %v755, %v751
    %v760 = vpack.c.b16 %v756, %v752
    %v761 = vpack.c.b16 %v757, %v753
    %vm766 = vcmask 130048
    %v768 = vsel %vm766, %v138, 0
    %770 = vmatprep.subr.bf16.mxu0 %v759
    %771 = vmatpush1.bf16.msra.mxu0 %v758
    %772 = vmatprep.subr.bf16.mxu0 0
    %773 = vmatpush1.bf16.msra.mxu0 0
    %774 = vmatprep.subr.bf16.mxu0 0
    %775 = vmatpush1.bf16.msra.mxu0 0
    %776 = vmatprep.subr.bf16.mxu0 0
    %777 = vmatpush1.bf16.msra.mxu0 0
    %778 = vmatprep.subr.bf16.mxu0 0
    %779 = vmatpush1.bf16.msra.mxu0 0
    %780 = vmatprep.subr.bf16.mxu0 0
    %781 = vmatpush1.bf16.msra.mxu0 0
    %782 = vmatprep.subr.bf16.mxu0 0
    %783 = vmatpush1.bf16.msra.mxu0 0
    %784 = vmatprep.subr.bf16.mxu0 0
    %785 = vmatpush1.bf16.msra.mxu0 0
    %786 = vmatprep.subr.bf16.mxu0 0
    %787 = vmatpush1.bf16.msra.mxu0 0
    %788 = vmatprep.subr.bf16.mxu0 0
    %789 = vmatpush1.bf16.msra.mxu0 0
    %790 = vmatprep.subr.bf16.mxu0 0
    %791 = vmatpush1.bf16.msra.mxu0 0
    %792 = vmatprep.subr.bf16.mxu0 0
    %793 = vmatpush1.bf16.msra.mxu0 0
    %794 = vmatprep.subr.bf16.mxu0 0
    %795 = vmatpush1.bf16.msra.mxu0 0
    %796 = vmatprep.subr.bf16.mxu0 0
    %797 = vmatpush1.bf16.msra.mxu0 0
    %798 = vmatprep.subr.bf16.mxu0 0
    %799 = vmatpush1.bf16.msra.mxu0 0
    %800 = vmatprep.subr.bf16.mxu0 0
    %801 = vmatpush1.bf16.msra.mxu0 0
    %802 = vmatprep.mubr.bf16.mxu0 0
    %803 = vmatmul.mubr.bf16.gmra.mrb[0].mxu0 %v768
    %v804 = vpop.f32.mrb[0].mxu0
    %v805 = vadd.f32 %v699, %v804
    %v806 = vpop.f32.mrb[0].mxu0
    %v807 = vadd.f32 %v701, %v806
    %v808 = vpop.f32.mrb[0].mxu0
    %v809 = vpop.f32.mrb[0].mxu0
    %810 = vdwg.mxu0
    %811 = vmatprep.subr.bf16.mxu0 %v761
    %812 = vmatpush1.bf16.msra.mxu0 %v760
    %813 = vmatprep.subr.bf16.mxu0 0
    %814 = vmatpush1.bf16.msra.mxu0 0
    %815 = vmatprep.subr.bf16.mxu0 0
    %816 = vmatpush1.bf16.msra.mxu0 0
    %817 = vmatprep.subr.bf16.mxu0 0
    %818 = vmatpush1.bf16.msra.mxu0 0
    %819 = vmatprep.subr.bf16.mxu0 0
    %820 = vmatpush1.bf16.msra.mxu0 0
    %821 = vmatprep.subr.bf16.mxu0 0
    %822 = vmatpush1.bf16.msra.mxu0 0
    %823 = vmatprep.subr.bf16.mxu0 0
    %824 = vmatpush1.bf16.msra.mxu0 0
    %825 = vmatprep.subr.bf16.mxu0 0
    %826 = vmatpush1.bf16.msra.mxu0 0
    %827 = vmatprep.subr.bf16.mxu0 0
    %828 = vmatpush1.bf16.msra.mxu0 0
    %829 = vmatprep.subr.bf16.mxu0 0
    %830 = vmatpush1.bf16.msra.mxu0 0
    %831 = vmatprep.subr.bf16.mxu0 0
    %832 = vmatpush1.bf16.msra.mxu0 0
    %833 = vmatprep.subr.bf16.mxu0 0
    %834 = vmatpush1.bf16.msra.mxu0 0
    %835 = vmatprep.subr.bf16.mxu0 0
    %836 = vmatpush1.bf16.msra.mxu0 0
    %837 = vmatprep.subr.bf16.mxu0 0
    %838 = vmatpush1.bf16.msra.mxu0 0
    %839 = vmatprep.subr.bf16.mxu0 0
    %840 = vmatpush1.bf16.msra.mxu0 0
    %841 = vmatprep.subr.bf16.mxu0 0
    %842 = vmatpush1.bf16.msra.mxu0 0
    %843 = vmatprep.mubr.bf16.mxu0 0
    %844 = vmatmul.mubr.bf16.gmra.mrb[0].mxu0 %v768
    %v845 = vpop.f32.mrb[0].mxu0
    %v846 = vadd.f32 %v740, %v845
    %v847 = vpop.f32.mrb[0].mxu0
    %v848 = vadd.f32 %v742, %v847
    %v849 = vpop.f32.mrb[0].mxu0
    %v850 = vpop.f32.mrb[0].mxu0
    %851 = vdwg.mxu0
    %v852 = vpack.c.bf16 %v458, %v458
    %v853 = vpack.c.bf16 %v467, %v467
    %v854 = vld [vmem:[%s11] sm:$0xff]
    %v855 = vld [vmem:[%s11 + $0x8] sm:$0xff]
    %v856 = vld [vmem:[%s11 + $0x10] sm:$0xff]
    %v857 = vld [vmem:[%s11 + $0x18] sm:$0xff]
    %v858 = vld [vmem:[%s11 + $0x20] sm:$0xff]
    %v859 = vld [vmem:[%s11 + $0x28] sm:$0xff]
    %v862 = vunpack.c.l.b16 %v852
    %v863 = vunpack.c.l.b16 %v853
    %vm864 = vcmask 1041409
    %v865 = vsel %vm864, %v863, %v862
    %v866 = vpack.c.b16 %v865, %v865
    %v873 = vunpack.c.l.b16 %v854
    %v874 = vunpack.c.h.b16 %v854
    %v875 = vunpack.c.l.b16 %v855
    %v876 = vunpack.c.h.b16 %v855
    %v877 = vunpack.c.l.b16 %v856
    %v878 = vunpack.c.h.b16 %v856
    %v879 = vunpack.c.l.b16 %v857
    %v880 = vunpack.c.h.b16 %v857
    %v881 = vunpack.c.l.b16 %v858
    %v882 = vunpack.c.h.b16 %v858
    %v883 = vunpack.c.l.b16 %v859
    %v884 = vunpack.c.h.b16 %v859
    %v885 = vpack.c.b16 %v877, %v873
    %v886 = vpack.c.b16 %v878, %v874
    %v887 = vpack.c.b16 %v879, %v875
    %v888 = vpack.c.b16 %v880, %v876
    %v889 = vpack.c.b16 %v881, %v881
    %v890 = vpack.c.b16 %v882, %v882
    %v891 = vpack.c.b16 %v883, %v883
    %v892 = vpack.c.b16 %v884, %v884
    %v898 = vsel %vm151, %v866, 0
    %v901 = vsel %vm158, %v889, 0
    %v904 = vsel %vm158, %v890, 0
    %v907 = vsel %vm158, %v891, 0
    %v910 = vsel %vm158, %v892, 0
    %912 = vmatprep.subr.bf16.mxu0 %v886
    %913 = vmatpush1.bf16.msra.mxu0 %v885
    %914 = vmatprep.subr.bf16.mxu0 %v904
    %915 = vmatpush1.bf16.msra.mxu0 %v901
    %916 = vmatprep.subr.bf16.mxu0 0
    %917 = vmatpush1.bf16.msra.mxu0 0
    %918 = vmatprep.subr.bf16.mxu0 0
    %919 = vmatpush1.bf16.msra.mxu0 0
    %920 = vmatprep.subr.bf16.mxu0 0
    %921 = vmatpush1.bf16.msra.mxu0 0
    %922 = vmatprep.subr.bf16.mxu0 0
    %923 = vmatpush1.bf16.msra.mxu0 0
    %924 = vmatprep.subr.bf16.mxu0 0
    %925 = vmatpush1.bf16.msra.mxu0 0
    %926 = vmatprep.subr.bf16.mxu0 0
    %927 = vmatpush1.bf16.msra.mxu0 0
    %928 = vmatprep.subr.bf16.mxu0 0
    %929 = vmatpush1.bf16.msra.mxu0 0
    %930 = vmatprep.subr.bf16.mxu0 0
    %931 = vmatpush1.bf16.msra.mxu0 0
    %932 = vmatprep.subr.bf16.mxu0 0
    %933 = vmatpush1.bf16.msra.mxu0 0
    %934 = vmatprep.subr.bf16.mxu0 0
    %935 = vmatpush1.bf16.msra.mxu0 0
    %936 = vmatprep.subr.bf16.mxu0 0
    %937 = vmatpush1.bf16.msra.mxu0 0
    %938 = vmatprep.subr.bf16.mxu0 0
    %939 = vmatpush1.bf16.msra.mxu0 0
    %940 = vmatprep.subr.bf16.mxu0 0
    %941 = vmatpush1.bf16.msra.mxu0 0
    %942 = vmatprep.subr.bf16.mxu0 0
    %943 = vmatpush1.bf16.msra.mxu0 0
    %944 = vmatprep.mubr.bf16.mxu0 0
    %945 = vmatmul.mubr.bf16.gmra.mrb[0].mxu0 %v898
    %v946 = vpop.f32.mrb[0].mxu0
    %v947 = vadd.f32 0.0, %v946
    %v948 = vpop.f32.mrb[0].mxu0
    %v949 = vadd.f32 0.0, %v948
    %v950 = vpop.f32.mrb[0].mxu0
    %v951 = vpop.f32.mrb[0].mxu0
    %952 = vdwg.mxu0
    %953 = vmatprep.subr.bf16.mxu0 %v888
    %954 = vmatpush1.bf16.msra.mxu0 %v887
    %955 = vmatprep.subr.bf16.mxu0 %v910
    %956 = vmatpush1.bf16.msra.mxu0 %v907
    %957 = vmatprep.subr.bf16.mxu0 0
    %958 = vmatpush1.bf16.msra.mxu0 0
    %959 = vmatprep.subr.bf16.mxu0 0
    %960 = vmatpush1.bf16.msra.mxu0 0
    %961 = vmatprep.subr.bf16.mxu0 0
    %962 = vmatpush1.bf16.msra.mxu0 0
    %963 = vmatprep.subr.bf16.mxu0 0
    %964 = vmatpush1.bf16.msra.mxu0 0
    %965 = vmatprep.subr.bf16.mxu0 0
    %966 = vmatpush1.bf16.msra.mxu0 0
    %967 = vmatprep.subr.bf16.mxu0 0
    %968 = vmatpush1.bf16.msra.mxu0 0
    %969 = vmatprep.subr.bf16.mxu0 0
    %970 = vmatpush1.bf16.msra.mxu0 0
    %971 = vmatprep.subr.bf16.mxu0 0
    %972 = vmatpush1.bf16.msra.mxu0 0
    %973 = vmatprep.subr.bf16.mxu0 0
    %974 = vmatpush1.bf16.msra.mxu0 0
    %975 = vmatprep.subr.bf16.mxu0 0
    %976 = vmatpush1.bf16.msra.mxu0 0
    %977 = vmatprep.subr.bf16.mxu0 0
    %978 = vmatpush1.bf16.msra.mxu0 0
    %979 = vmatprep.subr.bf16.mxu0 0
    %980 = vmatpush1.bf16.msra.mxu0 0
    %981 = vmatprep.subr.bf16.mxu0 0
    %982 = vmatpush1.bf16.msra.mxu0 0
    %983 = vmatprep.subr.bf16.mxu0 0
    %984 = vmatpush1.bf16.msra.mxu0 0
    %985 = vmatprep.mubr.bf16.mxu0 0
    %986 = vmatmul.mubr.bf16.gmra.mrb[0].mxu0 %v898
    %v987 = vpop.f32.mrb[0].mxu0
    %v988 = vadd.f32 0.0, %v987
    %v989 = vpop.f32.mrb[0].mxu0
    %v990 = vadd.f32 0.0, %v989
    %v991 = vpop.f32.mrb[0].mxu0
    %v992 = vpop.f32.mrb[0].mxu0
    %993 = vdwg.mxu0
    %v994 = vadd.f32 %v805, %v947
    %v995 = vadd.f32 %v807, %v949
    %v996 = vadd.f32 %v846, %v988
    %v997 = vadd.f32 %v848, %v990
    %v998 = vld [vmem:[%s12] sm:$0xf]
    %v1000 = vlaneseq
    %v1001 = vshrl.u32 %v1000, 7
    %v1002 = vsub.s32 0, %v1001
    %v1003 = vrot.slane %v998, %v1002
    %v1004 = vlaneseq
    %v1005 = vshrl.u32 %v1004, 7
    %v1006 = vsub.s32 1, %v1005
    %v1007 = vrot.slane %v998, %v1006
    %v1008 = vlaneseq
    %v1009 = vshrl.u32 %v1008, 7
    %v1010 = vsub.s32 2, %v1009
    %v1011 = vrot.slane %v998, %v1010
    %v1012 = vlaneseq
    %v1013 = vshrl.u32 %v1012, 7
    %v1014 = vsub.s32 3, %v1013
    %v1015 = vrot.slane %v998, %v1014
    %v1020 = vadd.f32 %v994, %v1003
    %v1021 = vadd.f32 %v995, %v1007
    %v1022 = vadd.f32 %v996, %v1011
    %v1023 = vadd.f32 %v997, %v1015
    %v1024 = vxor.u32 %v1020, 2147483648
    %v1025 = vmul.f32 %v1024, 1.442695
    %v1026 = vpow.pop %v1025
    %v1027 = vadd.f32 %v1026, 1.0
    %v1028 = vrcp.pop %v1027
    %v1029 = vmul.f32 1.0, %v1028
    %v1030 = vxor.u32 %v1021, 2147483648
    %v1031 = vmul.f32 %v1030, 1.442695
    %v1032 = vpow.pop %v1031
    %v1033 = vadd.f32 %v1032, 1.0
    %v1034 = vrcp.pop %v1033
    %v1035 = vmul.f32 1.0, %v1034
    %v1036 = vtanh.pop %v1022
    %v1037 = vxor.u32 %v1023, 2147483648
    %v1038 = vmul.f32 %v1037, 1.442695
    %v1039 = vpow.pop %v1038
    %v1040 = vadd.f32 %v1039, 1.0
    %v1041 = vrcp.pop %v1040
    %v1042 = vmul.f32 1.0, %v1041
    %v1043 = vld [vmem:[#allocation4] sm:$0x3]
    %v1044 = vmul.f32 %v1035, %v1043
    %v1045 = vmul.f32 %v1029, %v1036
    %v1046 = vadd.f32 %v1044, %v1045
    %v1047 = vtanh.pop %v1046
    %v1048 = vmul.f32 %v1042, %v1047
    %v1049 = vpack.c.bf16 %v1048, %v1048
    %v1050 = vld [vmem:[%s13] sm:$0xf]
    %v1051 = vld [vmem:[%s13 + $0x4] sm:$0xf]
    %v1052 = vld [vmem:[%s13 + $0x8] sm:$0xf]
    %v1053 = vld [vmem:[%s13 + $0xc] sm:$0xf]
    %v1054 = vld [vmem:[%s13 + $0x10] sm:$0xf]
    %v1055 = vld [vmem:[%s13 + $0x14] sm:$0xf]
    %v1056 = vld [vmem:[%s13 + $0x18] sm:$0xf]
    %v1057 = vld [vmem:[%s13 + $0x1c] sm:$0xf]
    %v1058 = vld [vmem:[%s13 + $0x20] sm:$0xf]
    %v1059 = vld [vmem:[%s13 + $0x24] sm:$0xf]
    %v1060 = vld [vmem:[%s13 + $0x28] sm:$0xf]
    %v1061 = vld [vmem:[%s13 + $0x2c] sm:$0xf]
    %v1062 = vld [vmem:[%s13 + $0x30] sm:$0xf]
    %v1063 = vld [vmem:[%s13 + $0x34] sm:$0xf]
    %v1064 = vld [vmem:[%s13 + $0x38] sm:$0xf]
    %v1065 = vld [vmem:[%s13 + $0x3c] sm:$0xf]
    %v1066 = vld [vmem:[%s14] sm:$0x1]
    %v1068 = vlaneseq
    %v1069 = vshrl.u32 %v1068, 7
    %v1070 = vsub.s32 0, %v1069
    %v1071 = vrot.slane %v1066, %v1070
    %v1089 = vunpack.c.l.b16 %v1050
    %v1090 = vunpack.c.l.b16 %v1051
    %v1091 = vunpack.c.l.b16 %v1052
    %v1092 = vunpack.c.l.b16 %v1053
    %v1093 = vunpack.c.l.b16 %v1054
    %v1094 = vunpack.c.l.b16 %v1055
    %v1095 = vunpack.c.l.b16 %v1056
    %v1096 = vunpack.c.l.b16 %v1057
    %v1097 = vunpack.c.l.b16 %v1058
    %v1098 = vunpack.c.l.b16 %v1059
    %v1099 = vunpack.c.l.b16 %v1060
    %v1100 = vunpack.c.l.b16 %v1061
    %v1101 = vunpack.c.l.b16 %v1062
    %v1102 = vunpack.c.l.b16 %v1063
    %v1103 = vunpack.c.l.b16 %v1064
    %v1104 = vunpack.c.l.b16 %v1065
    %v1105 = vpack.c.b16 %v1090, %v1089
    %v1106 = vpack.c.b16 %v1092, %v1091
    %v1107 = vpack.c.b16 %v1094, %v1093
    %v1108 = vpack.c.b16 %v1096, %v1095
    %v1109 = vpack.c.b16 %v1098, %v1097
    %v1110 = vpack.c.b16 %v1100, %v1099
    %v1111 = vpack.c.b16 %v1102, %v1101
    %v1112 = vpack.c.b16 %v1104, %v1103
    %1121 = vmatprep.subr.bf16.mxu0 0
    %1122 = vmatpush1.bf16.msra.mxu0 %v1105
    %1123 = vmatprep.subr.bf16.mxu0 0
    %1124 = vmatpush1.bf16.msra.mxu0 %v1106
    %1125 = vmatprep.subr.bf16.mxu0 0
    %1126 = vmatpush1.bf16.msra.mxu0 %v1107
    %1127 = vmatprep.subr.bf16.mxu0 0
    %1128 = vmatpush1.bf16.msra.mxu0 %v1108
    %1129 = vmatprep.subr.bf16.mxu0 0
    %1130 = vmatpush1.bf16.msra.mxu0 %v1109
    %1131 = vmatprep.subr.bf16.mxu0 0
    %1132 = vmatpush1.bf16.msra.mxu0 %v1110
    %1133 = vmatprep.subr.bf16.mxu0 0
    %1134 = vmatpush1.bf16.msra.mxu0 %v1111
    %1135 = vmatprep.subr.bf16.mxu0 0
    %1136 = vmatpush1.bf16.msra.mxu0 %v1112
    %1137 = vmatprep.subr.bf16.mxu0 0
    %1138 = vmatpush1.bf16.msra.mxu0 0
    %1139 = vmatprep.subr.bf16.mxu0 0
    %1140 = vmatpush1.bf16.msra.mxu0 0
    %1141 = vmatprep.subr.bf16.mxu0 0
    %1142 = vmatpush1.bf16.msra.mxu0 0
    %1143 = vmatprep.subr.bf16.mxu0 0
    %1144 = vmatpush1.bf16.msra.mxu0 0
    %1145 = vmatprep.subr.bf16.mxu0 0
    %1146 = vmatpush1.bf16.msra.mxu0 0
    %1147 = vmatprep.subr.bf16.mxu0 0
    %1148 = vmatpush1.bf16.msra.mxu0 0
    %1149 = vmatprep.subr.bf16.mxu0 0
    %1150 = vmatpush1.bf16.msra.mxu0 0
    %1151 = vmatprep.subr.bf16.mxu0 0
    %1152 = vmatpush1.bf16.msra.mxu0 0
    %1153 = vmatprep.mubr.bf16.mxu0 0
    %1154 = vmatmul.mubr.bf16.gmra.mrb[0].mxu0 %v1049
    %v1155 = vpop.f32.mrb[0].mxu0
    %v1156 = vadd.f32 %v1071, %v1155
    %v1157 = vpop.f32.mrb[0].mxu0
    %v1158 = vpop.f32.mrb[0].mxu0
    %v1159 = vpop.f32.mrb[0].mxu0
    %1160 = vdwg.mxu0
    %1161 = vst [vmem:[#allocation13] sm:$0x3] %v1156
    %1162 = vst [vmem:[#allocation14] sm:$0x3] %v1048
    %s1163 = scalar_lea.vmem [#allocation14], 2
    %1164 = vst [vmem:[%s1163] sm:$0x3] %v1046
    // Predicated region
    $region78: #{tpu_custom_call.1} parent=1 // pred_check
      _
    $region79: #{tpu_custom_call.1} parent=1 // pred_check_branch
      %1166 = sbr.rel (0) target = $region81
    $region80: #{tpu_custom_call.1} parent=1 // pred_region
      %s1168 = ssub.s32 32, 32
      %1169 = vsyncadd [#allocation6], %s1168
      %s1171 = sshll.u32 [#allocation13], 4
      %s1172 = int_to_ptr.vmem [resolvable:$true] %s1171
      %1174 = dma.vmem_to_hbm [thread:$0]  %s1172, 32, %s15, [#allocation6]
    $region81: #{tpu_custom_call.1} parent=1 // pred_fallthru
      _
    // Predicated region
    $region82: #{tpu_custom_call.1} parent=1 // pred_check
      _
    $region83: #{tpu_custom_call.1} parent=1 // pred_check_branch
      %1176 = sbr.rel (0) target = $region85
    $region84: #{tpu_custom_call.1} parent=1 // pred_region
      %s1178 = ssub.s32 64, 64
      %1179 = vsyncadd [#allocation15], %s1178
      %s1180 = sshll.u32 [#allocation14], 4
      %s1181 = int_to_ptr.vmem [resolvable:$true] %s1180
      %1186 = dma.vmem_to_hbm [thread:$0]  %s1181, 64, %s16, [#allocation15], 32, 32, 2
    $region85: #{tpu_custom_call.1} parent=1 // pred_fallthru
      _
    // Predicated region
    $region86: #{tpu_custom_call.1} parent=1 // pred_check
      _
    $region87: #{tpu_custom_call.1} parent=1 // pred_check_branch
      %1188 = sbr.rel (0) target = $region89
    $region88: #{tpu_custom_call.1} parent=1 // pred_region
      %1189 = dma.done [#allocation6], 32
    $region89: #{tpu_custom_call.1} parent=1 // pred_fallthru
      _
    // Predicated region
    $region90: #{tpu_custom_call.1} parent=1 // pred_check
      _
    $region91: #{tpu_custom_call.1} parent=1 // pred_check_branch
      %1191 = sbr.rel (0) target = $region93
    $region92: #{tpu_custom_call.1} parent=1 // pred_region
      %1192 = dma.done [#allocation15], 64
    $region93: #{tpu_custom_call.1} parent=1 // pred_fallthru
      _
    %1193 = vsyncpa [#allocation5], 1
    %1194 = vsyncpa [#allocation8], 1
    %1195 = vsyncpa [#allocation11], 1
    %1196 = vsyncpa [#allocation6], 1
    %1197 = vsyncpa [#allocation15], 1

</llo_original>
